<compile_context>
chip_gen: v5e
topology: v5e:2x2
jax: 0.10.0
libtpu: 0.0.40
codegen_flags: <defaults>
</compile_context>

<pallas_src>
import functools

import jax
import jax.numpy as jnp
from jax import lax
from jax.experimental import pallas as pl
from jax.experimental.pallas import tpu as pltpu


def _round_up(x, m):
    return ((x + m - 1) // m) * m


# ----------------------------------------------------------------------------
# Fused kernel: all LSTM layers + linear head in one invocation (no grid).
# ----------------------------------------------------------------------------
def _fused_mnist_kernel(num_layers, T, Bp, H, *refs):
    G = 4 * H                                    # packed gate width == carried state width
    x_ref = refs[0]
    layer_refs = [refs[1 + 3 * l: 4 + 3 * l] for l in range(num_layers)]
    base = 1 + 3 * num_layers
    wlin_ref, blin_ref, out_ref, gbuf_ref, hbuf_ref = refs[base:base + 5]

    # Constant lane helpers, hoisted out of all loops (a handful of vregs).
    lane = lax.broadcasted_iota(jnp.int32, (Bp, G), dimension=1)
    g_lane = (lane >= 2 * H) & (lane < 3 * H)    # cell-candidate (tanh) gate lanes
    # sigmoid(x) = 0.5*tanh(0.5*x) + 0.5 ; the 0.5 pre-scale of the i/f/o columns is
    # folded into the packed weights/bias, so ONE tanh per step covers all four gates.
    post_mul = jnp.where(g_lane, 1.0, 0.5).astype(jnp.float32)
    post_add = jnp.where(g_lane, 0.0, 0.5).astype(jnp.float32)
    state_mask = lane < H                        # meaningful h/c lanes; rest kept at 0

    h_last = jnp.zeros((Bp, G), jnp.float32)

    for layer in range(num_layers):
        wih_ref, whh_ref, b_ref = layer_refs[layer]

        # Hoisted input projection: one matmul covering every time step of this layer.
        layer_in = x_ref[...] if layer == 0 else hbuf_ref[...]
        gbuf_ref[...] = (
            jnp.dot(layer_in, wih_ref[...], preferred_element_type=jnp.float32)
            + b_ref[...]
        )

        write_hseq = layer < num_layers - 1      # last layer only needs h at t = T-1

        def step(t, carry, whh_ref=whh_ref, write_hseq=write_hseq):
            h, c = carry
            row = pl.multiple_of(t * Bp, Bp)
            # W_hh is read inside the step body (not hoisted into a live SSA value).
            gates = gbuf_ref[pl.ds(row, Bp), :] + jnp.dot(
                h.astype(jnp.bfloat16), whh_ref[...],
                preferred_element_type=jnp.float32)          # (Bp, G) f32
            act = jnp.tanh(gates) * post_mul + post_add      # i/f/o: sigmoid, g: tanh
            # Align f / g / o gate lanes with the state lanes [0, H) (XLU rotations).
            f_al = pltpu.roll(act, shift=3 * H, axis=1)
            g_al = pltpu.roll(act, shift=2 * H, axis=1)
            o_al = pltpu.roll(act, shift=H, axis=1)
            # Padded lanes (>= H) are forced to exactly 0 so they stay inert for the
            # next matmul even without relying on the zero-padded weight rows.
            c_new = jnp.where(state_mask, f_al * c + act * g_al, 0.0)
            h_new = o_al * jnp.tanh(c_new)                   # lanes >= H: o * tanh(0) == 0
            if write_hseq:
                hbuf_ref[pl.ds(row, Bp), :] = h_new.astype(jnp.bfloat16)
            return (h_new, c_new)

        h0 = jnp.zeros((Bp, G), jnp.float32)
        c0 = jnp.zeros((Bp, G), jnp.float32)
        h_last, _ = lax.fori_loop(0, T, step, (h0, c0), unroll=True)

    # Final Linear on the last layer's final hidden state (lane-dense padded output).
    out_ref[...] = (
        jnp.dot(h_last.astype(jnp.bfloat16), wlin_ref[...],
                preferred_element_type=jnp.float32)
        + blin_ref[...]
    )


# ----------------------------------------------------------------------------
# One-time weight repacking (hoisted out of the per-call path).
# ----------------------------------------------------------------------------
def prepare_params(params):
    """Repack PyTorch-layout LSTM/Linear weights into the kernel layout.

    Gates are packed as [i|f|g|o] along the last (lane) axis (width 4H), weights are
    pre-transposed, rows zero-padded to 4H where the input is the carried state, and
    the 0.5 pre-scale of sigmoid(x)=0.5*tanh(0.5*x)+0.5 is folded into the i/f/o gate
    columns (exact: scaling by 0.5 is lossless).  MXU operands are bf16; biases f32.
    """
    H = params["lstm"][0][1].shape[1]            # W_hh: (4H, H)
    G = 4 * H
    assert G % 128 == 0, "gate-packed layout expects 4*hidden_size to be lane dense"
    O = params["linear"][0].shape[0]
    Op = _round_up(O, 128)

    col = jnp.arange(G)
    ifo_scale = jnp.where((col >= 2 * H) & (col < 3 * H), 1.0, 0.5)   # g unscaled

    layers = []
    for li, (w_ih, w_hh, b_ih, b_hh) in enumerate(params["lstm"]):
        wih_t = w_ih.T * ifo_scale                                     # (D_in, G)
        if li > 0:                                                     # rows H -> G (zeros)
            wih_t = jnp.zeros((G, G), jnp.float32).at[:H, :].set(wih_t)
        whh_t = jnp.zeros((G, G), jnp.float32).at[:H, :].set(w_hh.T * ifo_scale)
        b_p = ((b_ih + b_hh) * ifo_scale).reshape(1, G).astype(jnp.float32)
        layers.append((wih_t.astype(jnp.bfloat16),
                       whh_t.astype(jnp.bfloat16),
                       b_p))

    w_lin, b_lin = params["linear"]
    wlin_p = jnp.zeros((G, Op), jnp.float32).at[:H, :O].set(w_lin.T)
    blin_p = jnp.zeros((1, Op), jnp.float32).at[:, :O].set(b_lin.reshape(1, -1))
    return {"layers": layers, "wlin": wlin_p.astype(jnp.bfloat16), "blin": blin_p}


# ----------------------------------------------------------------------------
# Forward pass (single pallas_call, jitted).
# ----------------------------------------------------------------------------
def _zero_index_map(ndim):          # no grid -> called with zero args
    return (0,) * ndim


def _full_vmem_spec(a):
    # ndim bound via functools.partial (avoids the late-binding lambda capture bug).
    return pl.BlockSpec(a.shape, functools.partial(_zero_index_map, a.ndim))


@functools.partial(jax.jit, static_argnames=("in_size", "out_size"))
def mnist_model_forward(xb, packed, *, in_size, out_size):
    """xb: (B, F) with F divisible by in_size (frame_step == frame_size)."""
    B, F = xb.shape
    T = F // in_size
    D = in_size
    G = packed["layers"][0][1].shape[1]          # packed gate / state width = 4H
    Op = packed["wlin"].shape[1]
    num_layers = len(packed["layers"])
    Bp = _round_up(B, 8)                         # sublane-dense batch

    # unfold + transpose: (B, F) -> time-major (T*Bp, D) bf16 MXU operand (tiny op).
    x = jnp.zeros((Bp, F), jnp.float32).at[:B, :].set(xb)
    x = x.reshape(Bp, T, D).transpose(1, 0, 2).reshape(T * Bp, D).astype(jnp.bfloat16)

    inputs = [x]
    for (wih, whh, b) in packed["layers"]:
        inputs += [wih, whh, b]
    inputs += [packed["wlin"], packed["blin"]]

    kernel = functools.partial(_fused_mnist_kernel, num_layers, T, Bp, G // 4)

    # TODO(synk): for realistic batch sizes on v7x, add a batch-tile grid axis with
    # dimension_semantics=("parallel",) so the second TensorCore runs half the batch.
    out = pl.pallas_call(
        kernel,
        out_shape=jax.ShapeDtypeStruct((Bp, Op), jnp.float32),
        in_specs=[_full_vmem_spec(a) for a in inputs],
        out_specs=pl.BlockSpec((Bp, Op), functools.partial(_zero_index_map, 2)),
        scratch_shapes=[
            pltpu.VMEM((T * Bp, G), jnp.float32),    # per-layer packed input projection
            pltpu.VMEM((T * Bp, G), jnp.bfloat16),   # inter-layer hidden sequence
        ],
    )(*inputs)
    return out[:B, :out_size]


# ----------------------------------------------------------------------------
# Pure-JAX f32 reference (PyTorch-equivalent math) for the correctness check.
# ----------------------------------------------------------------------------
def reference_forward(xb, params, in_size):
    B, F = xb.shape
    T = F // in_size
    x = xb.reshape(B, T, in_size).transpose(1, 0, 2)   # (T, B, D)
    h_seq = x
    for (w_ih, w_hh, b_ih, b_hh) in params["lstm"]:
        H = w_hh.shape[1]
        h = jnp.zeros((B, H), jnp.float32)
        c = jnp.zeros((B, H), jnp.float32)
        outs = []
        for t in range(T):
            gates = h_seq[t] @ w_ih.T + h @ w_hh.T + b_ih + b_hh
            i = jax.nn.sigmoid(gates[:, :H])
            f = jax.nn.sigmoid(gates[:, H:2 * H])
            g = jnp.tanh(gates[:, 2 * H:3 * H])
            o = jax.nn.sigmoid(gates[:, 3 * H:])
            c = f * c + i * g
            h = o * jnp.tanh(c)
            outs.append(h)
        h_seq = jnp.stack(outs)
    w_lin, b_lin = params["linear"]
    return h_seq[-1] @ w_lin.T + b_lin


def init_params(key, in_size, hidden_size, num_layers, out_size):
    """Deterministic PyTorch-style uniform init U(-1/sqrt(H), 1/sqrt(H))."""
    k = 1.0 / jnp.sqrt(hidden_size)
    params = {"lstm": []}
    for layer in range(num_layers):
        d_in = in_size if layer == 0 else hidden_size
        key, k1, k2, k3, k4 = jax.random.split(key, 5)
        w_ih = jax.random.uniform(k1, (4 * hidden_size, d_in), jnp.float32, -k, k)
        w_hh = jax.random.uniform(k2, (4 * hidden_size, hidden_size), jnp.float32, -k, k)
        b_ih = jax.random.uniform(k3, (4 * hidden_size,), jnp.float32, -k, k)
        b_hh = jax.random.uniform(k4, (4 * hidden_size,), jnp.float32, -k, k)
        params["lstm"].append((w_ih, w_hh, b_ih, b_hh))
    key, k5, k6 = jax.random.split(key, 3)
    w_lin = jax.random.uniform(k5, (out_size, hidden_size), jnp.float32, -k, k)
    b_lin = jax.random.uniform(k6, (out_size,), jnp.float32, -k, k)
    params["linear"] = (w_lin, b_lin)
    return params


if __name__ == "__main__":
    # Small shapes consistent with the module:
    # batch=2, in_size=frame_size=16, total features=128 -> seq_len=8,
    # hidden_size=32, num_layers=2, out_size=10.
    batch = 2
    in_size = 16
    seq_len = 8
    hidden_size = 32
    num_layers = 2
    out_size = 10

    key = jax.random.PRNGKey(0)
    key, pk, xk = jax.random.split(key, 3)
    params = init_params(pk, in_size, hidden_size, num_layers, out_size)
    xb = jax.random.normal(xk, (batch, seq_len * in_size), dtype=jnp.float32)

    packed = prepare_params(params)              # one-time repack, outside the hot path

    out = mnist_model_forward(xb, packed, in_size=in_size, out_size=out_size)
    jax.block_until_ready(out)
    assert out.shape == (batch, out_size)

    ref = reference_forward(xb, params, in_size)
    # bf16 MXU operands (weights + matmul LHS) vs a pure-f32 reference: allow small
    # mixed-precision drift (gate/c/h math stays f32, so observed error is ~1e-3 scale).
    max_err = jnp.max(jnp.abs(out - ref))
    assert jnp.allclose(out, ref, atol=2e-2, rtol=2e-2), (
        f"mismatch vs reference, max |err| = {max_err}")
    print("KERNEL_OK")
</pallas_src>

<mosaic_0001>
module attributes {stable_mosaic.version = 11 : i64} {
  func.func @_fused_mnist_kernel(%arg0: memref<64x16xbf16, #tpu.memory_space<vmem>>, %arg1: memref<16x128xbf16, #tpu.memory_space<vmem>>, %arg2: memref<128x128xbf16, #tpu.memory_space<vmem>>, %arg3: memref<1x128xf32, #tpu.memory_space<vmem>>, %arg4: memref<128x128xbf16, #tpu.memory_space<vmem>>, %arg5: memref<128x128xbf16, #tpu.memory_space<vmem>>, %arg6: memref<1x128xf32, #tpu.memory_space<vmem>>, %arg7: memref<128x128xbf16, #tpu.memory_space<vmem>>, %arg8: memref<1x128xf32, #tpu.memory_space<vmem>>, %arg9: memref<8x128xf32, #tpu.memory_space<vmem>>, %arg10: memref<64x128xf32, #tpu.memory_space<vmem>>, %arg11: memref<64x128xbf16, #tpu.memory_space<vmem>>) attributes {dimension_semantics = [], scalar_prefetch = 0 : i64, scratch_operands = 2 : i64, tpu.core_type = #tpu.core_type<tc>} {
    %0 = tpu.iota {dimensions = array<i32: 1>} : vector<8x128xi32>
    %c64_i32 = arith.constant 64 : i32
    %1 = vector.broadcast %c64_i32 : i32 to vector<8x128xi32>
    %2 = arith.cmpi sge, %0, %1 : vector<8x128xi32>
    %c96_i32 = arith.constant 96 : i32
    %3 = vector.broadcast %c96_i32 : i32 to vector<8x128xi32>
    %4 = arith.cmpi slt, %0, %3 : vector<8x128xi32>
    %5 = arith.andi %2, %4 : vector<8x128xi1>
    %cst = arith.constant 1.000000e+00 : f32
    %cst_0 = arith.constant 5.000000e-01 : f32
    %6 = vector.broadcast %cst : f32 to vector<8x128xf32>
    %7 = vector.broadcast %cst_0 : f32 to vector<8x128xf32>
    %8 = arith.select %5, %6, %7 : vector<8x128xi1>, vector<8x128xf32>
    %cst_1 = arith.constant 0.000000e+00 : f32
    %cst_2 = arith.constant 5.000000e-01 : f32
    %9 = vector.broadcast %cst_1 : f32 to vector<8x128xf32>
    %10 = vector.broadcast %cst_2 : f32 to vector<8x128xf32>
    %11 = arith.select %5, %9, %10 : vector<8x128xi1>, vector<8x128xf32>
    %c32_i32 = arith.constant 32 : i32
    %12 = vector.broadcast %c32_i32 : i32 to vector<8x128xi32>
    %13 = arith.cmpi slt, %0, %12 : vector<8x128xi32>
    %c0 = arith.constant 0 : index
    %c0_3 = arith.constant 0 : index
    %14 = vector.load %arg0[%c0, %c0_3] : memref<64x16xbf16, #tpu.memory_space<vmem>>, vector<64x16xbf16>
    %c0_4 = arith.constant 0 : index
    %c0_5 = arith.constant 0 : index
    %15 = vector.load %arg1[%c0_4, %c0_5] : memref<16x128xbf16, #tpu.memory_space<vmem>>, vector<16x128xbf16>
    %cst_6 = arith.constant dense<0.000000e+00> : vector<64x128xf32>
    %16 = tpu.matmul %14, %15, %cst_6 {dimension_numbers = #tpu.dot_dimension_numbers<[1], [0], [0], [1], [0, 0, 1, 1], [], []>} : vector<64x16xbf16>, vector<16x128xbf16>, vector<64x128xf32> -> vector<64x128xf32>
    %c0_7 = arith.constant 0 : index
    %c0_8 = arith.constant 0 : index
    %17 = vector.load %arg3[%c0_7, %c0_8] : memref<1x128xf32, #tpu.memory_space<vmem>>, vector<1x128xf32>
    %18 = vector.broadcast %17 : vector<1x128xf32> to vector<64x128xf32>
    %19 = arith.addf %16, %18 : vector<64x128xf32>
    %c0_9 = arith.constant 0 : index
    %c0_10 = arith.constant 0 : index
    %20 = vector.load %arg10[%c0_9, %c0_10] : memref<64x128xf32, #tpu.memory_space<vmem>>, vector<64x128xf32>
    tpu.vector_store %arg10[%c0_9, %c0_10], %19 {strides = array<i32>} : memref<64x128xf32, #tpu.memory_space<vmem>>, vector<64x128xf32>,
    %cst_11 = arith.constant 0.000000e+00 : f32
    %21 = vector.broadcast %cst_11 : f32 to vector<8x128xf32>
    %cst_12 = arith.constant 0.000000e+00 : f32
    %22 = vector.broadcast %cst_12 : f32 to vector<8x128xf32>
    %c0_i32 = arith.constant 0 : i32
    %c8_i32 = arith.constant 8 : i32
    %23 = arith.muli %c0_i32, %c8_i32 : i32
    %24 = tpu.assume_multiple %23, 8 : i32
    %25 = arith.index_cast %24 : i32 to index
    %c0_13 = arith.constant 0 : index
    %26 = vector.load %arg10[%25, %c0_13] : memref<64x128xf32, #tpu.memory_space<vmem>>, vector<8x128xf32>
    %27 = arith.truncf %21 : vector<8x128xf32> to vector<8x128xbf16>
    %c0_14 = arith.constant 0 : index
    %c0_15 = arith.constant 0 : index
    %28 = vector.load %arg2[%c0_14, %c0_15] : memref<128x128xbf16, #tpu.memory_space<vmem>>, vector<128x128xbf16>
    %cst_16 = arith.constant dense<0.000000e+00> : vector<8x128xf32>
    %29 = tpu.matmul %27, %28, %cst_16 {dimension_numbers = #tpu.dot_dimension_numbers<[1], [0], [0], [1], [0, 0, 1, 1], [], []>} : vector<8x128xbf16>, vector<128x128xbf16>, vector<8x128xf32> -> vector<8x128xf32>
    %30 = arith.addf %26, %29 : vector<8x128xf32>
    %31 = math.tanh %30 : vector<8x128xf32>
    %32 = arith.mulf %31, %8 : vector<8x128xf32>
    %33 = arith.addf %32, %11 : vector<8x128xf32>
    %c96_i32_17 = arith.constant 96 : i32
    %34 = tpu.dynamic_rotate %33 by %c96_i32_17 dim 1 : vector<8x128xf32>, i32 -> vector<8x128xf32>
    %c64_i32_18 = arith.constant 64 : i32
    %35 = tpu.dynamic_rotate %33 by %c64_i32_18 dim 1 : vector<8x128xf32>, i32 -> vector<8x128xf32>
    %c32_i32_19 = arith.constant 32 : i32
    %36 = tpu.dynamic_rotate %33 by %c32_i32_19 dim 1 : vector<8x128xf32>, i32 -> vector<8x128xf32>
    %37 = arith.mulf %34, %22 : vector<8x128xf32>
    %38 = arith.mulf %33, %35 : vector<8x128xf32>
    %39 = arith.addf %37, %38 : vector<8x128xf32>
    %cst_20 = arith.constant 0.000000e+00 : f32
    %40 = vector.broadcast %cst_20 : f32 to vector<8x128xf32>
    %41 = arith.select %13, %39, %40 : vector<8x128xi1>, vector<8x128xf32>
    %42 = math.tanh %41 : vector<8x128xf32>
    %43 = arith.mulf %36, %42 : vector<8x128xf32>
    %44 = arith.truncf %43 : vector<8x128xf32> to vector<8x128xbf16>
    %45 = arith.index_cast %24 : i32 to index
    %c0_21 = arith.constant 0 : index
    %46 = vector.load %arg11[%45, %c0_21] : memref<64x128xbf16, #tpu.memory_space<vmem>>, vector<8x128xbf16>
    tpu.vector_store %arg11[%45, %c0_21], %44 {strides = array<i32>} : memref<64x128xbf16, #tpu.memory_space<vmem>>, vector<8x128xbf16>,
    %c1_i32 = arith.constant 1 : i32
    %c8_i32_22 = arith.constant 8 : i32
    %47 = arith.muli %c1_i32, %c8_i32_22 : i32
    %48 = tpu.assume_multiple %47, 8 : i32
    %49 = arith.index_cast %48 : i32 to index
    %c0_23 = arith.constant 0 : index
    %50 = vector.load %arg10[%49, %c0_23] : memref<64x128xf32, #tpu.memory_space<vmem>>, vector<8x128xf32>
    %51 = arith.truncf %43 : vector<8x128xf32> to vector<8x128xbf16>
    %c0_24 = arith.constant 0 : index
    %c0_25 = arith.constant 0 : index
    %52 = vector.load %arg2[%c0_24, %c0_25] : memref<128x128xbf16, #tpu.memory_space<vmem>>, vector<128x128xbf16>
    %cst_26 = arith.constant dense<0.000000e+00> : vector<8x128xf32>
    %53 = tpu.matmul %51, %52, %cst_26 {dimension_numbers = #tpu.dot_dimension_numbers<[1], [0], [0], [1], [0, 0, 1, 1], [], []>} : vector<8x128xbf16>, vector<128x128xbf16>, vector<8x128xf32> -> vector<8x128xf32>
    %54 = arith.addf %50, %53 : vector<8x128xf32>
    %55 = math.tanh %54 : vector<8x128xf32>
    %56 = arith.mulf %55, %8 : vector<8x128xf32>
    %57 = arith.addf %56, %11 : vector<8x128xf32>
    %c96_i32_27 = arith.constant 96 : i32
    %58 = tpu.dynamic_rotate %57 by %c96_i32_27 dim 1 : vector<8x128xf32>, i32 -> vector<8x128xf32>
    %c64_i32_28 = arith.constant 64 : i32
    %59 = tpu.dynamic_rotate %57 by %c64_i32_28 dim 1 : vector<8x128xf32>, i32 -> vector<8x128xf32>
    %c32_i32_29 = arith.constant 32 : i32
    %60 = tpu.dynamic_rotate %57 by %c32_i32_29 dim 1 : vector<8x128xf32>, i32 -> vector<8x128xf32>
    %61 = arith.mulf %58, %41 : vector<8x128xf32>
    %62 = arith.mulf %57, %59 : vector<8x128xf32>
    %63 = arith.addf %61, %62 : vector<8x128xf32>
    %cst_30 = arith.constant 0.000000e+00 : f32
    %64 = vector.broadcast %cst_30 : f32 to vector<8x128xf32>
    %65 = arith.select %13, %63, %64 : vector<8x128xi1>, vector<8x128xf32>
    %66 = math.tanh %65 : vector<8x128xf32>
    %67 = arith.mulf %60, %66 : vector<8x128xf32>
    %68 = arith.truncf %67 : vector<8x128xf32> to vector<8x128xbf16>
    %69 = arith.index_cast %48 : i32 to index
    %c0_31 = arith.constant 0 : index
    %70 = vector.load %arg11[%69, %c0_31] : memref<64x128xbf16, #tpu.memory_space<vmem>>, vector<8x128xbf16>
    tpu.vector_store %arg11[%69, %c0_31], %68 {strides = array<i32>} : memref<64x128xbf16, #tpu.memory_space<vmem>>, vector<8x128xbf16>,
    %c2_i32 = arith.constant 2 : i32
    %c8_i32_32 = arith.constant 8 : i32
    %71 = arith.muli %c2_i32, %c8_i32_32 : i32
    %72 = tpu.assume_multiple %71, 8 : i32
    %73 = arith.index_cast %72 : i32 to index
    %c0_33 = arith.constant 0 : index
    %74 = vector.load %arg10[%73, %c0_33] : memref<64x128xf32, #tpu.memory_space<vmem>>, vector<8x128xf32>
    %75 = arith.truncf %67 : vector<8x128xf32> to vector<8x128xbf16>
    %c0_34 = arith.constant 0 : index
    %c0_35 = arith.constant 0 : index
    %76 = vector.load %arg2[%c0_34, %c0_35] : memref<128x128xbf16, #tpu.memory_space<vmem>>, vector<128x128xbf16>
    %cst_36 = arith.constant dense<0.000000e+00> : vector<8x128xf32>
    %77 = tpu.matmul %75, %76, %cst_36 {dimension_numbers = #tpu.dot_dimension_numbers<[1], [0], [0], [1], [0, 0, 1, 1], [], []>} : vector<8x128xbf16>, vector<128x128xbf16>, vector<8x128xf32> -> vector<8x128xf32>
    %78 = arith.addf %74, %77 : vector<8x128xf32>
    %79 = math.tanh %78 : vector<8x128xf32>
    %80 = arith.mulf %79, %8 : vector<8x128xf32>
    %81 = arith.addf %80, %11 : vector<8x128xf32>
    %c96_i32_37 = arith.constant 96 : i32
    %82 = tpu.dynamic_rotate %81 by %c96_i32_37 dim 1 : vector<8x128xf32>, i32 -> vector<8x128xf32>
    %c64_i32_38 = arith.constant 64 : i32
    %83 = tpu.dynamic_rotate %81 by %c64_i32_38 dim 1 : vector<8x128xf32>, i32 -> vector<8x128xf32>
    %c32_i32_39 = arith.constant 32 : i32
    %84 = tpu.dynamic_rotate %81 by %c32_i32_39 dim 1 : vector<8x128xf32>, i32 -> vector<8x128xf32>
    %85 = arith.mulf %82, %65 : vector<8x128xf32>
    %86 = arith.mulf %81, %83 : vector<8x128xf32>
    %87 = arith.addf %85, %86 : vector<8x128xf32>
    %cst_40 = arith.constant 0.000000e+00 : f32
    %88 = vector.broadcast %cst_40 : f32 to vector<8x128xf32>
    %89 = arith.select %13, %87, %88 : vector<8x128xi1>, vector<8x128xf32>
    %90 = math.tanh %89 : vector<8x128xf32>
    %91 = arith.mulf %84, %90 : vector<8x128xf32>
    %92 = arith.truncf %91 : vector<8x128xf32> to vector<8x128xbf16>
    %93 = arith.index_cast %72 : i32 to index
    %c0_41 = arith.constant 0 : index
    %94 = vector.load %arg11[%93, %c0_41] : memref<64x128xbf16, #tpu.memory_space<vmem>>, vector<8x128xbf16>
    tpu.vector_store %arg11[%93, %c0_41], %92 {strides = array<i32>} : memref<64x128xbf16, #tpu.memory_space<vmem>>, vector<8x128xbf16>,
    %c3_i32 = arith.constant 3 : i32
    %c8_i32_42 = arith.constant 8 : i32
    %95 = arith.muli %c3_i32, %c8_i32_42 : i32
    %96 = tpu.assume_multiple %95, 8 : i32
    %97 = arith.index_cast %96 : i32 to index
    %c0_43 = arith.constant 0 : index
    %98 = vector.load %arg10[%97, %c0_43] : memref<64x128xf32, #tpu.memory_space<vmem>>, vector<8x128xf32>
    %99 = arith.truncf %91 : vector<8x128xf32> to vector<8x128xbf16>
    %c0_44 = arith.constant 0 : index
    %c0_45 = arith.constant 0 : index
    %100 = vector.load %arg2[%c0_44, %c0_45] : memref<128x128xbf16, #tpu.memory_space<vmem>>, vector<128x128xbf16>
    %cst_46 = arith.constant dense<0.000000e+00> : vector<8x128xf32>
    %101 = tpu.matmul %99, %100, %cst_46 {dimension_numbers = #tpu.dot_dimension_numbers<[1], [0], [0], [1], [0, 0, 1, 1], [], []>} : vector<8x128xbf16>, vector<128x128xbf16>, vector<8x128xf32> -> vector<8x128xf32>
    %102 = arith.addf %98, %101 : vector<8x128xf32>
    %103 = math.tanh %102 : vector<8x128xf32>
    %104 = arith.mulf %103, %8 : vector<8x128xf32>
    %105 = arith.addf %104, %11 : vector<8x128xf32>
    %c96_i32_47 = arith.constant 96 : i32
    %106 = tpu.dynamic_rotate %105 by %c96_i32_47 dim 1 : vector<8x128xf32>, i32 -> vector<8x128xf32>
    %c64_i32_48 = arith.constant 64 : i32
    %107 = tpu.dynamic_rotate %105 by %c64_i32_48 dim 1 : vector<8x128xf32>, i32 -> vector<8x128xf32>
    %c32_i32_49 = arith.constant 32 : i32
    %108 = tpu.dynamic_rotate %105 by %c32_i32_49 dim 1 : vector<8x128xf32>, i32 -> vector<8x128xf32>
    %109 = arith.mulf %106, %89 : vector<8x128xf32>
    %110 = arith.mulf %105, %107 : vector<8x128xf32>
    %111 = arith.addf %109, %110 : vector<8x128xf32>
    %cst_50 = arith.constant 0.000000e+00 : f32
    %112 = vector.broadcast %cst_50 : f32 to vector<8x128xf32>
    %113 = arith.select %13, %111, %112 : vector<8x128xi1>, vector<8x128xf32>
    %114 = math.tanh %113 : vector<8x128xf32>
    %115 = arith.mulf %108, %114 : vector<8x128xf32>
    %116 = arith.truncf %115 : vector<8x128xf32> to vector<8x128xbf16>
    %117 = arith.index_cast %96 : i32 to index
    %c0_51 = arith.constant 0 : index
    %118 = vector.load %arg11[%117, %c0_51] : memref<64x128xbf16, #tpu.memory_space<vmem>>, vector<8x128xbf16>
    tpu.vector_store %arg11[%117, %c0_51], %116 {strides = array<i32>} : memref<64x128xbf16, #tpu.memory_space<vmem>>, vector<8x128xbf16>,
    %c4_i32 = arith.constant 4 : i32
    %c8_i32_52 = arith.constant 8 : i32
    %119 = arith.muli %c4_i32, %c8_i32_52 : i32
    %120 = tpu.assume_multiple %119, 8 : i32
    %121 = arith.index_cast %120 : i32 to index
    %c0_53 = arith.constant 0 : index
    %122 = vector.load %arg10[%121, %c0_53] : memref<64x128xf32, #tpu.memory_space<vmem>>, vector<8x128xf32>
    %123 = arith.truncf %115 : vector<8x128xf32> to vector<8x128xbf16>
    %c0_54 = arith.constant 0 : index
    %c0_55 = arith.constant 0 : index
    %124 = vector.load %arg2[%c0_54, %c0_55] : memref<128x128xbf16, #tpu.memory_space<vmem>>, vector<128x128xbf16>
    %cst_56 = arith.constant dense<0.000000e+00> : vector<8x128xf32>
    %125 = tpu.matmul %123, %124, %cst_56 {dimension_numbers = #tpu.dot_dimension_numbers<[1], [0], [0], [1], [0, 0, 1, 1], [], []>} : vector<8x128xbf16>, vector<128x128xbf16>, vector<8x128xf32> -> vector<8x128xf32>
    %126 = arith.addf %122, %125 : vector<8x128xf32>
    %127 = math.tanh %126 : vector<8x128xf32>
    %128 = arith.mulf %127, %8 : vector<8x128xf32>
    %129 = arith.addf %128, %11 : vector<8x128xf32>
    %c96_i32_57 = arith.constant 96 : i32
    %130 = tpu.dynamic_rotate %129 by %c96_i32_57 dim 1 : vector<8x128xf32>, i32 -> vector<8x128xf32>
    %c64_i32_58 = arith.constant 64 : i32
    %131 = tpu.dynamic_rotate %129 by %c64_i32_58 dim 1 : vector<8x128xf32>, i32 -> vector<8x128xf32>
    %c32_i32_59 = arith.constant 32 : i32
    %132 = tpu.dynamic_rotate %129 by %c32_i32_59 dim 1 : vector<8x128xf32>, i32 -> vector<8x128xf32>
    %133 = arith.mulf %130, %113 : vector<8x128xf32>
    %134 = arith.mulf %129, %131 : vector<8x128xf32>
    %135 = arith.addf %133, %134 : vector<8x128xf32>
    %cst_60 = arith.constant 0.000000e+00 : f32
    %136 = vector.broadcast %cst_60 : f32 to vector<8x128xf32>
    %137 = arith.select %13, %135, %136 : vector<8x128xi1>, vector<8x128xf32>
    %138 = math.tanh %137 : vector<8x128xf32>
    %139 = arith.mulf %132, %138 : vector<8x128xf32>
    %140 = arith.truncf %139 : vector<8x128xf32> to vector<8x128xbf16>
    %141 = arith.index_cast %120 : i32 to index
    %c0_61 = arith.constant 0 : index
    %142 = vector.load %arg11[%141, %c0_61] : memref<64x128xbf16, #tpu.memory_space<vmem>>, vector<8x128xbf16>
    tpu.vector_store %arg11[%141, %c0_61], %140 {strides = array<i32>} : memref<64x128xbf16, #tpu.memory_space<vmem>>, vector<8x128xbf16>,
    %c5_i32 = arith.constant 5 : i32
    %c8_i32_62 = arith.constant 8 : i32
    %143 = arith.muli %c5_i32, %c8_i32_62 : i32
    %144 = tpu.assume_multiple %143, 8 : i32
    %145 = arith.index_cast %144 : i32 to index
    %c0_63 = arith.constant 0 : index
    %146 = vector.load %arg10[%145, %c0_63] : memref<64x128xf32, #tpu.memory_space<vmem>>, vector<8x128xf32>
    %147 = arith.truncf %139 : vector<8x128xf32> to vector<8x128xbf16>
    %c0_64 = arith.constant 0 : index
    %c0_65 = arith.constant 0 : index
    %148 = vector.load %arg2[%c0_64, %c0_65] : memref<128x128xbf16, #tpu.memory_space<vmem>>, vector<128x128xbf16>
    %cst_66 = arith.constant dense<0.000000e+00> : vector<8x128xf32>
    %149 = tpu.matmul %147, %148, %cst_66 {dimension_numbers = #tpu.dot_dimension_numbers<[1], [0], [0], [1], [0, 0, 1, 1], [], []>} : vector<8x128xbf16>, vector<128x128xbf16>, vector<8x128xf32> -> vector<8x128xf32>
    %150 = arith.addf %146, %149 : vector<8x128xf32>
    %151 = math.tanh %150 : vector<8x128xf32>
    %152 = arith.mulf %151, %8 : vector<8x128xf32>
    %153 = arith.addf %152, %11 : vector<8x128xf32>
    %c96_i32_67 = arith.constant 96 : i32
    %154 = tpu.dynamic_rotate %153 by %c96_i32_67 dim 1 : vector<8x128xf32>, i32 -> vector<8x128xf32>
    %c64_i32_68 = arith.constant 64 : i32
    %155 = tpu.dynamic_rotate %153 by %c64_i32_68 dim 1 : vector<8x128xf32>, i32 -> vector<8x128xf32>
    %c32_i32_69 = arith.constant 32 : i32
    %156 = tpu.dynamic_rotate %153 by %c32_i32_69 dim 1 : vector<8x128xf32>, i32 -> vector<8x128xf32>
    %157 = arith.mulf %154, %137 : vector<8x128xf32>
    %158 = arith.mulf %153, %155 : vector<8x128xf32>
    %159 = arith.addf %157, %158 : vector<8x128xf32>
    %cst_70 = arith.constant 0.000000e+00 : f32
    %160 = vector.broadcast %cst_70 : f32 to vector<8x128xf32>
    %161 = arith.select %13, %159, %160 : vector<8x128xi1>, vector<8x128xf32>
    %162 = math.tanh %161 : vector<8x128xf32>
    %163 = arith.mulf %156, %162 : vector<8x128xf32>
    %164 = arith.truncf %163 : vector<8x128xf32> to vector<8x128xbf16>
    %165 = arith.index_cast %144 : i32 to index
    %c0_71 = arith.constant 0 : index
    %166 = vector.load %arg11[%165, %c0_71] : memref<64x128xbf16, #tpu.memory_space<vmem>>, vector<8x128xbf16>
    tpu.vector_store %arg11[%165, %c0_71], %164 {strides = array<i32>} : memref<64x128xbf16, #tpu.memory_space<vmem>>, vector<8x128xbf16>,
    %c6_i32 = arith.constant 6 : i32
    %c8_i32_72 = arith.constant 8 : i32
    %167 = arith.muli %c6_i32, %c8_i32_72 : i32
    %168 = tpu.assume_multiple %167, 8 : i32
    %169 = arith.index_cast %168 : i32 to index
    %c0_73 = arith.constant 0 : index
    %170 = vector.load %arg10[%169, %c0_73] : memref<64x128xf32, #tpu.memory_space<vmem>>, vector<8x128xf32>
    %171 = arith.truncf %163 : vector<8x128xf32> to vector<8x128xbf16>
    %c0_74 = arith.constant 0 : index
    %c0_75 = arith.constant 0 : index
    %172 = vector.load %arg2[%c0_74, %c0_75] : memref<128x128xbf16, #tpu.memory_space<vmem>>, vector<128x128xbf16>
    %cst_76 = arith.constant dense<0.000000e+00> : vector<8x128xf32>
    %173 = tpu.matmul %171, %172, %cst_76 {dimension_numbers = #tpu.dot_dimension_numbers<[1], [0], [0], [1], [0, 0, 1, 1], [], []>} : vector<8x128xbf16>, vector<128x128xbf16>, vector<8x128xf32> -> vector<8x128xf32>
    %174 = arith.addf %170, %173 : vector<8x128xf32>
    %175 = math.tanh %174 : vector<8x128xf32>
    %176 = arith.mulf %175, %8 : vector<8x128xf32>
    %177 = arith.addf %176, %11 : vector<8x128xf32>
    %c96_i32_77 = arith.constant 96 : i32
    %178 = tpu.dynamic_rotate %177 by %c96_i32_77 dim 1 : vector<8x128xf32>, i32 -> vector<8x128xf32>
    %c64_i32_78 = arith.constant 64 : i32
    %179 = tpu.dynamic_rotate %177 by %c64_i32_78 dim 1 : vector<8x128xf32>, i32 -> vector<8x128xf32>
    %c32_i32_79 = arith.constant 32 : i32
    %180 = tpu.dynamic_rotate %177 by %c32_i32_79 dim 1 : vector<8x128xf32>, i32 -> vector<8x128xf32>
    %181 = arith.mulf %178, %161 : vector<8x128xf32>
    %182 = arith.mulf %177, %179 : vector<8x128xf32>
    %183 = arith.addf %181, %182 : vector<8x128xf32>
    %cst_80 = arith.constant 0.000000e+00 : f32
    %184 = vector.broadcast %cst_80 : f32 to vector<8x128xf32>
    %185 = arith.select %13, %183, %184 : vector<8x128xi1>, vector<8x128xf32>
    %186 = math.tanh %185 : vector<8x128xf32>
    %187 = arith.mulf %180, %186 : vector<8x128xf32>
    %188 = arith.truncf %187 : vector<8x128xf32> to vector<8x128xbf16>
    %189 = arith.index_cast %168 : i32 to index
    %c0_81 = arith.constant 0 : index
    %190 = vector.load %arg11[%189, %c0_81] : memref<64x128xbf16, #tpu.memory_space<vmem>>, vector<8x128xbf16>
    tpu.vector_store %arg11[%189, %c0_81], %188 {strides = array<i32>} : memref<64x128xbf16, #tpu.memory_space<vmem>>, vector<8x128xbf16>,
    %c7_i32 = arith.constant 7 : i32
    %c8_i32_82 = arith.constant 8 : i32
    %191 = arith.muli %c7_i32, %c8_i32_82 : i32
    %192 = tpu.assume_multiple %191, 8 : i32
    %193 = arith.index_cast %192 : i32 to index
    %c0_83 = arith.constant 0 : index
    %194 = vector.load %arg10[%193, %c0_83] : memref<64x128xf32, #tpu.memory_space<vmem>>, vector<8x128xf32>
    %195 = arith.truncf %187 : vector<8x128xf32> to vector<8x128xbf16>
    %c0_84 = arith.constant 0 : index
    %c0_85 = arith.constant 0 : index
    %196 = vector.load %arg2[%c0_84, %c0_85] : memref<128x128xbf16, #tpu.memory_space<vmem>>, vector<128x128xbf16>
    %cst_86 = arith.constant dense<0.000000e+00> : vector<8x128xf32>
    %197 = tpu.matmul %195, %196, %cst_86 {dimension_numbers = #tpu.dot_dimension_numbers<[1], [0], [0], [1], [0, 0, 1, 1], [], []>} : vector<8x128xbf16>, vector<128x128xbf16>, vector<8x128xf32> -> vector<8x128xf32>
    %198 = arith.addf %194, %197 : vector<8x128xf32>
    %199 = math.tanh %198 : vector<8x128xf32>
    %200 = arith.mulf %199, %8 : vector<8x128xf32>
    %201 = arith.addf %200, %11 : vector<8x128xf32>
    %c96_i32_87 = arith.constant 96 : i32
    %202 = tpu.dynamic_rotate %201 by %c96_i32_87 dim 1 : vector<8x128xf32>, i32 -> vector<8x128xf32>
    %c64_i32_88 = arith.constant 64 : i32
    %203 = tpu.dynamic_rotate %201 by %c64_i32_88 dim 1 : vector<8x128xf32>, i32 -> vector<8x128xf32>
    %c32_i32_89 = arith.constant 32 : i32
    %204 = tpu.dynamic_rotate %201 by %c32_i32_89 dim 1 : vector<8x128xf32>, i32 -> vector<8x128xf32>
    %205 = arith.mulf %202, %185 : vector<8x128xf32>
    %206 = arith.mulf %201, %203 : vector<8x128xf32>
    %207 = arith.addf %205, %206 : vector<8x128xf32>
    %cst_90 = arith.constant 0.000000e+00 : f32
    %208 = vector.broadcast %cst_90 : f32 to vector<8x128xf32>
    %209 = arith.select %13, %207, %208 : vector<8x128xi1>, vector<8x128xf32>
    %210 = math.tanh %209 : vector<8x128xf32>
    %211 = arith.mulf %204, %210 : vector<8x128xf32>
    %212 = arith.truncf %211 : vector<8x128xf32> to vector<8x128xbf16>
    %213 = arith.index_cast %192 : i32 to index
    %c0_91 = arith.constant 0 : index
    %214 = vector.load %arg11[%213, %c0_91] : memref<64x128xbf16, #tpu.memory_space<vmem>>, vector<8x128xbf16>
    tpu.vector_store %arg11[%213, %c0_91], %212 {strides = array<i32>} : memref<64x128xbf16, #tpu.memory_space<vmem>>, vector<8x128xbf16>,
    %c8_i32_92 = arith.constant 8 : i32
    %c0_93 = arith.constant 0 : index
    %c0_94 = arith.constant 0 : index
    %215 = vector.load %arg11[%c0_93, %c0_94] : memref<64x128xbf16, #tpu.memory_space<vmem>>, vector<64x128xbf16>
    %c0_95 = arith.constant 0 : index
    %c0_96 = arith.constant 0 : index
    %216 = vector.load %arg4[%c0_95, %c0_96] : memref<128x128xbf16, #tpu.memory_space<vmem>>, vector<128x128xbf16>
    %cst_97 = arith.constant dense<0.000000e+00> : vector<64x128xf32>
    %217 = tpu.matmul %215, %216, %cst_97 {dimension_numbers = #tpu.dot_dimension_numbers<[1], [0], [0], [1], [0, 0, 1, 1], [], []>} : vector<64x128xbf16>, vector<128x128xbf16>, vector<64x128xf32> -> vector<64x128xf32>
    %c0_98 = arith.constant 0 : index
    %c0_99 = arith.constant 0 : index
    %218 = vector.load %arg6[%c0_98, %c0_99] : memref<1x128xf32, #tpu.memory_space<vmem>>, vector<1x128xf32>
    %219 = vector.broadcast %218 : vector<1x128xf32> to vector<64x128xf32>
    %220 = arith.addf %217, %219 : vector<64x128xf32>
    %c0_100 = arith.constant 0 : index
    %c0_101 = arith.constant 0 : index
    %221 = vector.load %arg10[%c0_100, %c0_101] : memref<64x128xf32, #tpu.memory_space<vmem>>, vector<64x128xf32>
    tpu.vector_store %arg10[%c0_100, %c0_101], %220 {strides = array<i32>} : memref<64x128xf32, #tpu.memory_space<vmem>>, vector<64x128xf32>,
    %cst_102 = arith.constant 0.000000e+00 : f32
    %222 = vector.broadcast %cst_102 : f32 to vector<8x128xf32>
    %cst_103 = arith.constant 0.000000e+00 : f32
    %223 = vector.broadcast %cst_103 : f32 to vector<8x128xf32>
    %c0_i32_104 = arith.constant 0 : i32
    %c8_i32_105 = arith.constant 8 : i32
    %224 = arith.muli %c0_i32_104, %c8_i32_105 : i32
    %225 = tpu.assume_multiple %224, 8 : i32
    %226 = arith.index_cast %225 : i32 to index
    %c0_106 = arith.constant 0 : index
    %227 = vector.load %arg10[%226, %c0_106] : memref<64x128xf32, #tpu.memory_space<vmem>>, vector<8x128xf32>
    %228 = arith.truncf %222 : vector<8x128xf32> to vector<8x128xbf16>
    %c0_107 = arith.constant 0 : index
    %c0_108 = arith.constant 0 : index
    %229 = vector.load %arg5[%c0_107, %c0_108] : memref<128x128xbf16, #tpu.memory_space<vmem>>, vector<128x128xbf16>
    %cst_109 = arith.constant dense<0.000000e+00> : vector<8x128xf32>
    %230 = tpu.matmul %228, %229, %cst_109 {dimension_numbers = #tpu.dot_dimension_numbers<[1], [0], [0], [1], [0, 0, 1, 1], [], []>} : vector<8x128xbf16>, vector<128x128xbf16>, vector<8x128xf32> -> vector<8x128xf32>
    %231 = arith.addf %227, %230 : vector<8x128xf32>
    %232 = math.tanh %231 : vector<8x128xf32>
    %233 = arith.mulf %232, %8 : vector<8x128xf32>
    %234 = arith.addf %233, %11 : vector<8x128xf32>
    %c96_i32_110 = arith.constant 96 : i32
    %235 = tpu.dynamic_rotate %234 by %c96_i32_110 dim 1 : vector<8x128xf32>, i32 -> vector<8x128xf32>
    %c64_i32_111 = arith.constant 64 : i32
    %236 = tpu.dynamic_rotate %234 by %c64_i32_111 dim 1 : vector<8x128xf32>, i32 -> vector<8x128xf32>
    %c32_i32_112 = arith.constant 32 : i32
    %237 = tpu.dynamic_rotate %234 by %c32_i32_112 dim 1 : vector<8x128xf32>, i32 -> vector<8x128xf32>
    %238 = arith.mulf %235, %223 : vector<8x128xf32>
    %239 = arith.mulf %234, %236 : vector<8x128xf32>
    %240 = arith.addf %238, %239 : vector<8x128xf32>
    %cst_113 = arith.constant 0.000000e+00 : f32
    %241 = vector.broadcast %cst_113 : f32 to vector<8x128xf32>
    %242 = arith.select %13, %240, %241 : vector<8x128xi1>, vector<8x128xf32>
    %243 = math.tanh %242 : vector<8x128xf32>
    %244 = arith.mulf %237, %243 : vector<8x128xf32>
    %c1_i32_114 = arith.constant 1 : i32
    %c8_i32_115 = arith.constant 8 : i32
    %245 = arith.muli %c1_i32_114, %c8_i32_115 : i32
    %246 = tpu.assume_multiple %245, 8 : i32
    %247 = arith.index_cast %246 : i32 to index
    %c0_116 = arith.constant 0 : index
    %248 = vector.load %arg10[%247, %c0_116] : memref<64x128xf32, #tpu.memory_space<vmem>>, vector<8x128xf32>
    %249 = arith.truncf %244 : vector<8x128xf32> to vector<8x128xbf16>
    %c0_117 = arith.constant 0 : index
    %c0_118 = arith.constant 0 : index
    %250 = vector.load %arg5[%c0_117, %c0_118] : memref<128x128xbf16, #tpu.memory_space<vmem>>, vector<128x128xbf16>
    %cst_119 = arith.constant dense<0.000000e+00> : vector<8x128xf32>
    %251 = tpu.matmul %249, %250, %cst_119 {dimension_numbers = #tpu.dot_dimension_numbers<[1], [0], [0], [1], [0, 0, 1, 1], [], []>} : vector<8x128xbf16>, vector<128x128xbf16>, vector<8x128xf32> -> vector<8x128xf32>
    %252 = arith.addf %248, %251 : vector<8x128xf32>
    %253 = math.tanh %252 : vector<8x128xf32>
    %254 = arith.mulf %253, %8 : vector<8x128xf32>
    %255 = arith.addf %254, %11 : vector<8x128xf32>
    %c96_i32_120 = arith.constant 96 : i32
    %256 = tpu.dynamic_rotate %255 by %c96_i32_120 dim 1 : vector<8x128xf32>, i32 -> vector<8x128xf32>
    %c64_i32_121 = arith.constant 64 : i32
    %257 = tpu.dynamic_rotate %255 by %c64_i32_121 dim 1 : vector<8x128xf32>, i32 -> vector<8x128xf32>
    %c32_i32_122 = arith.constant 32 : i32
    %258 = tpu.dynamic_rotate %255 by %c32_i32_122 dim 1 : vector<8x128xf32>, i32 -> vector<8x128xf32>
    %259 = arith.mulf %256, %242 : vector<8x128xf32>
    %260 = arith.mulf %255, %257 : vector<8x128xf32>
    %261 = arith.addf %259, %260 : vector<8x128xf32>
    %cst_123 = arith.constant 0.000000e+00 : f32
    %262 = vector.broadcast %cst_123 : f32 to vector<8x128xf32>
    %263 = arith.select %13, %261, %262 : vector<8x128xi1>, vector<8x128xf32>
    %264 = math.tanh %263 : vector<8x128xf32>
    %265 = arith.mulf %258, %264 : vector<8x128xf32>
    %c2_i32_124 = arith.constant 2 : i32
    %c8_i32_125 = arith.constant 8 : i32
    %266 = arith.muli %c2_i32_124, %c8_i32_125 : i32
    %267 = tpu.assume_multiple %266, 8 : i32
    %268 = arith.index_cast %267 : i32 to index
    %c0_126 = arith.constant 0 : index
    %269 = vector.load %arg10[%268, %c0_126] : memref<64x128xf32, #tpu.memory_space<vmem>>, vector<8x128xf32>
    %270 = arith.truncf %265 : vector<8x128xf32> to vector<8x128xbf16>
    %c0_127 = arith.constant 0 : index
    %c0_128 = arith.constant 0 : index
    %271 = vector.load %arg5[%c0_127, %c0_128] : memref<128x128xbf16, #tpu.memory_space<vmem>>, vector<128x128xbf16>
    %cst_129 = arith.constant dense<0.000000e+00> : vector<8x128xf32>
    %272 = tpu.matmul %270, %271, %cst_129 {dimension_numbers = #tpu.dot_dimension_numbers<[1], [0], [0], [1], [0, 0, 1, 1], [], []>} : vector<8x128xbf16>, vector<128x128xbf16>, vector<8x128xf32> -> vector<8x128xf32>
    %273 = arith.addf %269, %272 : vector<8x128xf32>
    %274 = math.tanh %273 : vector<8x128xf32>
    %275 = arith.mulf %274, %8 : vector<8x128xf32>
    %276 = arith.addf %275, %11 : vector<8x128xf32>
    %c96_i32_130 = arith.constant 96 : i32
    %277 = tpu.dynamic_rotate %276 by %c96_i32_130 dim 1 : vector<8x128xf32>, i32 -> vector<8x128xf32>
    %c64_i32_131 = arith.constant 64 : i32
    %278 = tpu.dynamic_rotate %276 by %c64_i32_131 dim 1 : vector<8x128xf32>, i32 -> vector<8x128xf32>
    %c32_i32_132 = arith.constant 32 : i32
    %279 = tpu.dynamic_rotate %276 by %c32_i32_132 dim 1 : vector<8x128xf32>, i32 -> vector<8x128xf32>
    %280 = arith.mulf %277, %263 : vector<8x128xf32>
    %281 = arith.mulf %276, %278 : vector<8x128xf32>
    %282 = arith.addf %280, %281 : vector<8x128xf32>
    %cst_133 = arith.constant 0.000000e+00 : f32
    %283 = vector.broadcast %cst_133 : f32 to vector<8x128xf32>
    %284 = arith.select %13, %282, %283 : vector<8x128xi1>, vector<8x128xf32>
    %285 = math.tanh %284 : vector<8x128xf32>
    %286 = arith.mulf %279, %285 : vector<8x128xf32>
    %c3_i32_134 = arith.constant 3 : i32
    %c8_i32_135 = arith.constant 8 : i32
    %287 = arith.muli %c3_i32_134, %c8_i32_135 : i32
    %288 = tpu.assume_multiple %287, 8 : i32
    %289 = arith.index_cast %288 : i32 to index
    %c0_136 = arith.constant 0 : index
    %290 = vector.load %arg10[%289, %c0_136] : memref<64x128xf32, #tpu.memory_space<vmem>>, vector<8x128xf32>
    %291 = arith.truncf %286 : vector<8x128xf32> to vector<8x128xbf16>
    %c0_137 = arith.constant 0 : index
    %c0_138 = arith.constant 0 : index
    %292 = vector.load %arg5[%c0_137, %c0_138] : memref<128x128xbf16, #tpu.memory_space<vmem>>, vector<128x128xbf16>
    %cst_139 = arith.constant dense<0.000000e+00> : vector<8x128xf32>
    %293 = tpu.matmul %291, %292, %cst_139 {dimension_numbers = #tpu.dot_dimension_numbers<[1], [0], [0], [1], [0, 0, 1, 1], [], []>} : vector<8x128xbf16>, vector<128x128xbf16>, vector<8x128xf32> -> vector<8x128xf32>
    %294 = arith.addf %290, %293 : vector<8x128xf32>
    %295 = math.tanh %294 : vector<8x128xf32>
    %296 = arith.mulf %295, %8 : vector<8x128xf32>
    %297 = arith.addf %296, %11 : vector<8x128xf32>
    %c96_i32_140 = arith.constant 96 : i32
    %298 = tpu.dynamic_rotate %297 by %c96_i32_140 dim 1 : vector<8x128xf32>, i32 -> vector<8x128xf32>
    %c64_i32_141 = arith.constant 64 : i32
    %299 = tpu.dynamic_rotate %297 by %c64_i32_141 dim 1 : vector<8x128xf32>, i32 -> vector<8x128xf32>
    %c32_i32_142 = arith.constant 32 : i32
    %300 = tpu.dynamic_rotate %297 by %c32_i32_142 dim 1 : vector<8x128xf32>, i32 -> vector<8x128xf32>
    %301 = arith.mulf %298, %284 : vector<8x128xf32>
    %302 = arith.mulf %297, %299 : vector<8x128xf32>
    %303 = arith.addf %301, %302 : vector<8x128xf32>
    %cst_143 = arith.constant 0.000000e+00 : f32
    %304 = vector.broadcast %cst_143 : f32 to vector<8x128xf32>
    %305 = arith.select %13, %303, %304 : vector<8x128xi1>, vector<8x128xf32>
    %306 = math.tanh %305 : vector<8x128xf32>
    %307 = arith.mulf %300, %306 : vector<8x128xf32>
    %c4_i32_144 = arith.constant 4 : i32
    %c8_i32_145 = arith.constant 8 : i32
    %308 = arith.muli %c4_i32_144, %c8_i32_145 : i32
    %309 = tpu.assume_multiple %308, 8 : i32
    %310 = arith.index_cast %309 : i32 to index
    %c0_146 = arith.constant 0 : index
    %311 = vector.load %arg10[%310, %c0_146] : memref<64x128xf32, #tpu.memory_space<vmem>>, vector<8x128xf32>
    %312 = arith.truncf %307 : vector<8x128xf32> to vector<8x128xbf16>
    %c0_147 = arith.constant 0 : index
    %c0_148 = arith.constant 0 : index
    %313 = vector.load %arg5[%c0_147, %c0_148] : memref<128x128xbf16, #tpu.memory_space<vmem>>, vector<128x128xbf16>
    %cst_149 = arith.constant dense<0.000000e+00> : vector<8x128xf32>
    %314 = tpu.matmul %312, %313, %cst_149 {dimension_numbers = #tpu.dot_dimension_numbers<[1], [0], [0], [1], [0, 0, 1, 1], [], []>} : vector<8x128xbf16>, vector<128x128xbf16>, vector<8x128xf32> -> vector<8x128xf32>
    %315 = arith.addf %311, %314 : vector<8x128xf32>
    %316 = math.tanh %315 : vector<8x128xf32>
    %317 = arith.mulf %316, %8 : vector<8x128xf32>
    %318 = arith.addf %317, %11 : vector<8x128xf32>
    %c96_i32_150 = arith.constant 96 : i32
    %319 = tpu.dynamic_rotate %318 by %c96_i32_150 dim 1 : vector<8x128xf32>, i32 -> vector<8x128xf32>
    %c64_i32_151 = arith.constant 64 : i32
    %320 = tpu.dynamic_rotate %318 by %c64_i32_151 dim 1 : vector<8x128xf32>, i32 -> vector<8x128xf32>
    %c32_i32_152 = arith.constant 32 : i32
    %321 = tpu.dynamic_rotate %318 by %c32_i32_152 dim 1 : vector<8x128xf32>, i32 -> vector<8x128xf32>
    %322 = arith.mulf %319, %305 : vector<8x128xf32>
    %323 = arith.mulf %318, %320 : vector<8x128xf32>
    %324 = arith.addf %322, %323 : vector<8x128xf32>
    %cst_153 = arith.constant 0.000000e+00 : f32
    %325 = vector.broadcast %cst_153 : f32 to vector<8x128xf32>
    %326 = arith.select %13, %324, %325 : vector<8x128xi1>, vector<8x128xf32>
    %327 = math.tanh %326 : vector<8x128xf32>
    %328 = arith.mulf %321, %327 : vector<8x128xf32>
    %c5_i32_154 = arith.constant 5 : i32
    %c8_i32_155 = arith.constant 8 : i32
    %329 = arith.muli %c5_i32_154, %c8_i32_155 : i32
    %330 = tpu.assume_multiple %329, 8 : i32
    %331 = arith.index_cast %330 : i32 to index
    %c0_156 = arith.constant 0 : index
    %332 = vector.load %arg10[%331, %c0_156] : memref<64x128xf32, #tpu.memory_space<vmem>>, vector<8x128xf32>
    %333 = arith.truncf %328 : vector<8x128xf32> to vector<8x128xbf16>
    %c0_157 = arith.constant 0 : index
    %c0_158 = arith.constant 0 : index
    %334 = vector.load %arg5[%c0_157, %c0_158] : memref<128x128xbf16, #tpu.memory_space<vmem>>, vector<128x128xbf16>
    %cst_159 = arith.constant dense<0.000000e+00> : vector<8x128xf32>
    %335 = tpu.matmul %333, %334, %cst_159 {dimension_numbers = #tpu.dot_dimension_numbers<[1], [0], [0], [1], [0, 0, 1, 1], [], []>} : vector<8x128xbf16>, vector<128x128xbf16>, vector<8x128xf32> -> vector<8x128xf32>
    %336 = arith.addf %332, %335 : vector<8x128xf32>
    %337 = math.tanh %336 : vector<8x128xf32>
    %338 = arith.mulf %337, %8 : vector<8x128xf32>
    %339 = arith.addf %338, %11 : vector<8x128xf32>
    %c96_i32_160 = arith.constant 96 : i32
    %340 = tpu.dynamic_rotate %339 by %c96_i32_160 dim 1 : vector<8x128xf32>, i32 -> vector<8x128xf32>
    %c64_i32_161 = arith.constant 64 : i32
    %341 = tpu.dynamic_rotate %339 by %c64_i32_161 dim 1 : vector<8x128xf32>, i32 -> vector<8x128xf32>
    %c32_i32_162 = arith.constant 32 : i32
    %342 = tpu.dynamic_rotate %339 by %c32_i32_162 dim 1 : vector<8x128xf32>, i32 -> vector<8x128xf32>
    %343 = arith.mulf %340, %326 : vector<8x128xf32>
    %344 = arith.mulf %339, %341 : vector<8x128xf32>
    %345 = arith.addf %343, %344 : vector<8x128xf32>
    %cst_163 = arith.constant 0.000000e+00 : f32
    %346 = vector.broadcast %cst_163 : f32 to vector<8x128xf32>
    %347 = arith.select %13, %345, %346 : vector<8x128xi1>, vector<8x128xf32>
    %348 = math.tanh %347 : vector<8x128xf32>
    %349 = arith.mulf %342, %348 : vector<8x128xf32>
    %c6_i32_164 = arith.constant 6 : i32
    %c8_i32_165 = arith.constant 8 : i32
    %350 = arith.muli %c6_i32_164, %c8_i32_165 : i32
    %351 = tpu.assume_multiple %350, 8 : i32
    %352 = arith.index_cast %351 : i32 to index
    %c0_166 = arith.constant 0 : index
    %353 = vector.load %arg10[%352, %c0_166] : memref<64x128xf32, #tpu.memory_space<vmem>>, vector<8x128xf32>
    %354 = arith.truncf %349 : vector<8x128xf32> to vector<8x128xbf16>
    %c0_167 = arith.constant 0 : index
    %c0_168 = arith.constant 0 : index
    %355 = vector.load %arg5[%c0_167, %c0_168] : memref<128x128xbf16, #tpu.memory_space<vmem>>, vector<128x128xbf16>
    %cst_169 = arith.constant dense<0.000000e+00> : vector<8x128xf32>
    %356 = tpu.matmul %354, %355, %cst_169 {dimension_numbers = #tpu.dot_dimension_numbers<[1], [0], [0], [1], [0, 0, 1, 1], [], []>} : vector<8x128xbf16>, vector<128x128xbf16>, vector<8x128xf32> -> vector<8x128xf32>
    %357 = arith.addf %353, %356 : vector<8x128xf32>
    %358 = math.tanh %357 : vector<8x128xf32>
    %359 = arith.mulf %358, %8 : vector<8x128xf32>
    %360 = arith.addf %359, %11 : vector<8x128xf32>
    %c96_i32_170 = arith.constant 96 : i32
    %361 = tpu.dynamic_rotate %360 by %c96_i32_170 dim 1 : vector<8x128xf32>, i32 -> vector<8x128xf32>
    %c64_i32_171 = arith.constant 64 : i32
    %362 = tpu.dynamic_rotate %360 by %c64_i32_171 dim 1 : vector<8x128xf32>, i32 -> vector<8x128xf32>
    %c32_i32_172 = arith.constant 32 : i32
    %363 = tpu.dynamic_rotate %360 by %c32_i32_172 dim 1 : vector<8x128xf32>, i32 -> vector<8x128xf32>
    %364 = arith.mulf %361, %347 : vector<8x128xf32>
    %365 = arith.mulf %360, %362 : vector<8x128xf32>
    %366 = arith.addf %364, %365 : vector<8x128xf32>
    %cst_173 = arith.constant 0.000000e+00 : f32
    %367 = vector.broadcast %cst_173 : f32 to vector<8x128xf32>
    %368 = arith.select %13, %366, %367 : vector<8x128xi1>, vector<8x128xf32>
    %369 = math.tanh %368 : vector<8x128xf32>
    %370 = arith.mulf %363, %369 : vector<8x128xf32>
    %c7_i32_174 = arith.constant 7 : i32
    %c8_i32_175 = arith.constant 8 : i32
    %371 = arith.muli %c7_i32_174, %c8_i32_175 : i32
    %372 = tpu.assume_multiple %371, 8 : i32
    %373 = arith.index_cast %372 : i32 to index
    %c0_176 = arith.constant 0 : index
    %374 = vector.load %arg10[%373, %c0_176] : memref<64x128xf32, #tpu.memory_space<vmem>>, vector<8x128xf32>
    %375 = arith.truncf %370 : vector<8x128xf32> to vector<8x128xbf16>
    %c0_177 = arith.constant 0 : index
    %c0_178 = arith.constant 0 : index
    %376 = vector.load %arg5[%c0_177, %c0_178] : memref<128x128xbf16, #tpu.memory_space<vmem>>, vector<128x128xbf16>
    %cst_179 = arith.constant dense<0.000000e+00> : vector<8x128xf32>
    %377 = tpu.matmul %375, %376, %cst_179 {dimension_numbers = #tpu.dot_dimension_numbers<[1], [0], [0], [1], [0, 0, 1, 1], [], []>} : vector<8x128xbf16>, vector<128x128xbf16>, vector<8x128xf32> -> vector<8x128xf32>
    %378 = arith.addf %374, %377 : vector<8x128xf32>
    %379 = math.tanh %378 : vector<8x128xf32>
    %380 = arith.mulf %379, %8 : vector<8x128xf32>
    %381 = arith.addf %380, %11 : vector<8x128xf32>
    %c96_i32_180 = arith.constant 96 : i32
    %382 = tpu.dynamic_rotate %381 by %c96_i32_180 dim 1 : vector<8x128xf32>, i32 -> vector<8x128xf32>
    %c64_i32_181 = arith.constant 64 : i32
    %383 = tpu.dynamic_rotate %381 by %c64_i32_181 dim 1 : vector<8x128xf32>, i32 -> vector<8x128xf32>
    %c32_i32_182 = arith.constant 32 : i32
    %384 = tpu.dynamic_rotate %381 by %c32_i32_182 dim 1 : vector<8x128xf32>, i32 -> vector<8x128xf32>
    %385 = arith.mulf %382, %368 : vector<8x128xf32>
    %386 = arith.mulf %381, %383 : vector<8x128xf32>
    %387 = arith.addf %385, %386 : vector<8x128xf32>
    %cst_183 = arith.constant 0.000000e+00 : f32
    %388 = vector.broadcast %cst_183 : f32 to vector<8x128xf32>
    %389 = arith.select %13, %387, %388 : vector<8x128xi1>, vector<8x128xf32>
    %390 = math.tanh %389 : vector<8x128xf32>
    %391 = arith.mulf %384, %390 : vector<8x128xf32>
    %c8_i32_184 = arith.constant 8 : i32
    %392 = arith.truncf %391 : vector<8x128xf32> to vector<8x128xbf16>
    %c0_185 = arith.constant 0 : index
    %c0_186 = arith.constant 0 : index
    %393 = vector.load %arg7[%c0_185, %c0_186] : memref<128x128xbf16, #tpu.memory_space<vmem>>, vector<128x128xbf16>
    %cst_187 = arith.constant dense<0.000000e+00> : vector<8x128xf32>
    %394 = tpu.matmul %392, %393, %cst_187 {dimension_numbers = #tpu.dot_dimension_numbers<[1], [0], [0], [1], [0, 0, 1, 1], [], []>} : vector<8x128xbf16>, vector<128x128xbf16>, vector<8x128xf32> -> vector<8x128xf32>
    %c0_188 = arith.constant 0 : index
    %c0_189 = arith.constant 0 : index
    %395 = vector.load %arg8[%c0_188, %c0_189] : memref<1x128xf32, #tpu.memory_space<vmem>>, vector<1x128xf32>
    %396 = vector.broadcast %395 : vector<1x128xf32> to vector<8x128xf32>
    %397 = arith.addf %394, %396 : vector<8x128xf32>
    %c0_190 = arith.constant 0 : index
    %c0_191 = arith.constant 0 : index
    %398 = vector.load %arg9[%c0_190, %c0_191] : memref<8x128xf32, #tpu.memory_space<vmem>>, vector<8x128xf32>
    tpu.vector_store %arg9[%c0_190, %c0_191], %397 {strides = array<i32>} : memref<8x128xf32, #tpu.memory_space<vmem>>, vector<8x128xf32>,
    return
  }
}

</mosaic_0001>

<llo_original>
// kernel: mnist_model_forward.1
$region0: #{mnist_model_forward.1}
  #allocation0 [shape = 'u32[]', space=smem, size = 0x4, offset = 0x4, fixed_abs, tag = 'smem constant byte address 0x4 - core index']
  #allocation1 [shape = 'u32[72,128]{1,0:T(1,128)}', space=vmem, size = 0x9000, scoped, tag = 'internal scratch']
  #allocation2 [shape = 'f32[64,128]{1,0:T(8,128)}', space=vmem, size = 0x8000, scoped, tag = 'scratch operand']
  #allocation3 [shape = 'bf16[64,128]{1,0:T(8,128)(2,1)}', space=vmem, size = 0x4000, scoped, tag = 'scratch operand']
  %s0 = inlined_call_operand.vmem [shape: bf16[64,16], index: 0, kind: input, shape index: {}]
  %s1 = inlined_call_operand.vmem [shape: bf16[16,128], index: 1, kind: input, shape index: {}]
  %s2 = inlined_call_operand.vmem [shape: bf16[128,128], index: 2, kind: input, shape index: {}]
  %s3 = inlined_call_operand.vmem [shape: f32[1,128], index: 3, kind: input, shape index: {}]
  %s4 = inlined_call_operand.hbm [shape: bf16[128,128], index: 4, kind: input, shape index: {}]
  %s5 = inlined_call_operand.hbm [shape: bf16[128,128], index: 5, kind: input, shape index: {}]
  %s6 = inlined_call_operand.vmem [shape: f32[1,128], index: 6, kind: input, shape index: {}]
  %s7 = inlined_call_operand.hbm [shape: bf16[128,128], index: 7, kind: input, shape index: {}]
  %s8 = inlined_call_operand.vmem [shape: f32[1,128], index: 8, kind: input, shape index: {}]
  %s9 = inlined_call_operand.vmem [shape: f32[8,128], index: 9, kind: output, shape index: {}]
  %s10 = sld [smem:[#allocation0]]
  $region58: #{mnist_model_forward.1} parent=0
    _
  %s12 = ssub.s32 1, %s10
  %s13 = scalar_select 0, %s12, %s10
  $region1: #{mnist_model_forward.1} parent=0
    #allocation4 [shape = 'u8[32768]{0}', space=vmem, size = 0x8000, scoped, tag = 'input window, operand 4, single buffered']
    #allocation5 [shape = 's32[1]{0}', space=sflag, size = 0x4, scoped, tag = 'scoped memory for mnist_model_forward.1']
    #allocation6 [shape = 'u8[32768]{0}', space=vmem, size = 0x8000, scoped, tag = 'input window, operand 5, single buffered']
    #allocation7 [shape = 's32[1]{0}', space=sflag, size = 0x4, scoped, tag = 'scoped memory for mnist_model_forward.1']
    #allocation8 [shape = 'u8[32768]{0}', space=vmem, size = 0x8000, scoped, tag = 'input window, operand 7, single buffered']
    %14 = vsyncpa [#allocation5], 0
    %15 = vsyncpa [#allocation7], 0
    // Predicated region
    $region2: #{mnist_model_forward.1} parent=1 // pred_check
      _
    $region3: #{mnist_model_forward.1} parent=1 // pred_check_branch
      %17 = sbr.rel (0) target = $region5
    $region4: #{mnist_model_forward.1} parent=1 // pred_region
      _
    $region5: #{mnist_model_forward.1} parent=1 // pred_fallthru
      _
    // Predicated region
    $region6: #{mnist_model_forward.1} parent=1 // pred_check
      _
    $region7: #{mnist_model_forward.1} parent=1 // pred_check_branch
      %19 = sbr.rel (0) target = $region9
    $region8: #{mnist_model_forward.1} parent=1 // pred_region
      _
    $region9: #{mnist_model_forward.1} parent=1 // pred_fallthru
      _
    // Predicated region
    $region10: #{mnist_model_forward.1} parent=1 // pred_check
      _
    $region11: #{mnist_model_forward.1} parent=1 // pred_check_branch
      %21 = sbr.rel (0) target = $region13
    $region12: #{mnist_model_forward.1} parent=1 // pred_region
      _
    $region13: #{mnist_model_forward.1} parent=1 // pred_fallthru
      _
    // Predicated region
    $region14: #{mnist_model_forward.1} parent=1 // pred_check
      _
    $region15: #{mnist_model_forward.1} parent=1 // pred_check_branch
      %23 = sbr.rel (0) target = $region17
    $region16: #{mnist_model_forward.1} parent=1 // pred_region
      _
    $region17: #{mnist_model_forward.1} parent=1 // pred_fallthru
      _
    // Predicated region
    $region18: #{mnist_model_forward.1} parent=1 // pred_check
      _
    $region19: #{mnist_model_forward.1} parent=1 // pred_check_branch
      %25 = sbr.rel (0) target = $region21
    $region20: #{mnist_model_forward.1} parent=1 // pred_region
      %27 = vsyncadd [#allocation5], 0
      %s28 = sshll.u32 %s4, 4
      %s29 = int_to_ptr.hbm [resolvable:$true] %s28
      %s30 = sshll.u32 [#allocation4], 4
      %s31 = int_to_ptr.vmem [resolvable:$true] %s30
      %36 = dma.hbm_to_vmem [thread:$0]  %s29, 1024, %s31, [#allocation5], 64, 64, 4
    $region21: #{mnist_model_forward.1} parent=1 // pred_fallthru
      _
    // Predicated region
    $region22: #{mnist_model_forward.1} parent=1 // pred_check
      _
    $region23: #{mnist_model_forward.1} parent=1 // pred_check_branch
      %38 = sbr.rel (0) target = $region25
    $region24: #{mnist_model_forward.1} parent=1 // pred_region
      %40 = vsyncadd [#allocation7], 0
      %s41 = sshll.u32 %s5, 4
      %s42 = int_to_ptr.hbm [resolvable:$true] %s41
      %s43 = sshll.u32 [#allocation6], 4
      %s44 = int_to_ptr.vmem [resolvable:$true] %s43
      %49 = dma.hbm_to_vmem [thread:$0]  %s42, 1024, %s44, [#allocation7], 64, 64, 4
    $region25: #{mnist_model_forward.1} parent=1 // pred_fallthru
      _
    // Predicated region
    $region26: #{mnist_model_forward.1} parent=1 // pred_check
      _
    $region27: #{mnist_model_forward.1} parent=1 // pred_check_branch
      %51 = sbr.rel (0) target = $region29
    $region28: #{mnist_model_forward.1} parent=1 // pred_region
      _
    $region29: #{mnist_model_forward.1} parent=1 // pred_fallthru
      _
    // Predicated region
    $region30: #{mnist_model_forward.1} parent=1 // pred_check
      _
    $region31: #{mnist_model_forward.1} parent=1 // pred_check_branch
      %53 = sbr.rel (0) target = $region33
    $region32: #{mnist_model_forward.1} parent=1 // pred_region
      %55 = vsyncadd [#allocation7], 0
      %s56 = sshll.u32 %s7, 4
      %s57 = int_to_ptr.hbm [resolvable:$true] %s56
      %s58 = sshll.u32 [#allocation8], 4
      %s59 = int_to_ptr.vmem [resolvable:$true] %s58
      %64 = dma.hbm_to_vmem [thread:$0]  %s57, 1024, %s59, [#allocation7], 64, 64, 4
    $region33: #{mnist_model_forward.1} parent=1 // pred_fallthru
      _
    // Predicated region
    $region34: #{mnist_model_forward.1} parent=1 // pred_check
      _
    $region35: #{mnist_model_forward.1} parent=1 // pred_check_branch
      %66 = sbr.rel (0) target = $region37
    $region36: #{mnist_model_forward.1} parent=1 // pred_region
      _
    $region37: #{mnist_model_forward.1} parent=1 // pred_fallthru
      _
    // Predicated region
    $region38: #{mnist_model_forward.1} parent=1 // pred_check
      _
    $region39: #{mnist_model_forward.1} parent=1 // pred_check_branch
      %68 = sbr.rel (0) target = $region41
    $region40: #{mnist_model_forward.1} parent=1 // pred_region
      %70 = dma.done [#allocation5], 1024
    $region41: #{mnist_model_forward.1} parent=1 // pred_fallthru
      _
    // Predicated region
    $region42: #{mnist_model_forward.1} parent=1 // pred_check
      _
    $region43: #{mnist_model_forward.1} parent=1 // pred_check_branch
      %72 = sbr.rel (0) target = $region45
    $region44: #{mnist_model_forward.1} parent=1 // pred_region
      %74 = dma.done [#allocation7], 1024
    $region45: #{mnist_model_forward.1} parent=1 // pred_fallthru
      _
    // Predicated region
    $region46: #{mnist_model_forward.1} parent=1 // pred_check
      _
    $region47: #{mnist_model_forward.1} parent=1 // pred_check_branch
      %76 = sbr.rel (0) target = $region49
    $region48: #{mnist_model_forward.1} parent=1 // pred_region
      %78 = dma.done [#allocation7], 1024
    $region49: #{mnist_model_forward.1} parent=1 // pred_fallthru
      _
    %v80 = vlaneseq
    %v81 = vand.u32 %v80, 127
    %vm82 = vcmp.ge.s32.totalorder %v81, 64
    %vm83 = vcmp.lt.s32.totalorder %v81, 96
    %vm84 = vmand %vm82, %vm83
    %v85 = vsel %vm84, 1.0, 0.5
    %v86 = vsel %vm84, 0.0, 0.5
    %vm87 = vcmp.lt.s32.totalorder %v81, 32
    %v88 = vld [vmem:[%s0] sm:$0xf]
    %v89 = vld [vmem:[%s0 + $0x4] sm:$0xf]
    %v90 = vld [vmem:[%s0 + $0x8] sm:$0xf]
    %v91 = vld [vmem:[%s0 + $0xc] sm:$0xf]
    %v92 = vld [vmem:[%s0 + $0x10] sm:$0xf]
    %v93 = vld [vmem:[%s0 + $0x14] sm:$0xf]
    %v94 = vld [vmem:[%s0 + $0x18] sm:$0xf]
    %v95 = vld [vmem:[%s0 + $0x1c] sm:$0xf]
    %v96 = vld [vmem:[%s1] sm:$0xf]
    %v97 = vld [vmem:[%s1 + $0x4] sm:$0xf]
    %v98 = vld [vmem:[%s3] sm:$0x1]
    %v100 = vperm.slane %v98, 0
    %v110 = vunpack.c.l.b16 %v88
    %v111 = vunpack.c.l.b16 %v89
    %v112 = vunpack.c.l.b16 %v90
    %v113 = vunpack.c.l.b16 %v91
    %v114 = vunpack.c.l.b16 %v92
    %v115 = vunpack.c.l.b16 %v93
    %v116 = vunpack.c.l.b16 %v94
    %v117 = vunpack.c.l.b16 %v95
    %v118 = vpack.c.b16 %v111, %v110
    %v119 = vpack.c.b16 %v113, %v112
    %v120 = vpack.c.b16 %v115, %v114
    %v121 = vpack.c.b16 %v117, %v116
    %v124 = vunpack.c.l.b16 %v96
    %v125 = vunpack.c.l.b16 %v97
    %v126 = vpack.c.b16 %v125, %v124
    %vm128 = vcmask 130048
    %v130 = vsel %vm128, %v118, 0
    %v133 = vsel %vm128, %v119, 0
    %v136 = vsel %vm128, %v120, 0
    %v139 = vsel %vm128, %v121, 0
    %141 = vmatpush.bf16.msra.mxu0 0
    %142 = vmatpush.bf16.msra.mxu0 0
    %143 = vmatpush.bf16.msra.mxu0 0
    %144 = vmatpush.bf16.msra.mxu0 0
    %145 = vmatpush.bf16.msra.mxu0 0
    %146 = vmatpush.bf16.msra.mxu0 0
    %147 = vmatpush.bf16.msra.mxu0 0
    %148 = vmatpush.bf16.msra.mxu0 %v126
    %149 = vmatmul.bf16.gmra.mxu0 %v130
    %v150 = vpop.f32.mrf.mxu0
    %v151 = vadd.f32 %v100, %v150
    %v152 = vpop.f32.mrf.mxu0
    %v153 = vadd.f32 %v100, %v152
    %154 = vmatmul.bf16.gmra.mxu0 %v133
    %v155 = vpop.f32.mrf.mxu0
    %v156 = vadd.f32 %v100, %v155
    %v157 = vpop.f32.mrf.mxu0
    %v158 = vadd.f32 %v100, %v157
    %159 = vmatmul.bf16.gmra.mxu0 %v136
    %v160 = vpop.f32.mrf.mxu0
    %v161 = vadd.f32 %v100, %v160
    %v162 = vpop.f32.mrf.mxu0
    %v163 = vadd.f32 %v100, %v162
    %164 = vmatmul.bf16.gmra.mxu0 %v139
    %v165 = vpop.f32.mrf.mxu0
    %v166 = vadd.f32 %v100, %v165
    %v167 = vpop.f32.mrf.mxu0
    %v168 = vadd.f32 %v100, %v167
    %169 = vdwg.mxu0
    %170 = vst [vmem:[#allocation2] sm:$0xff] %v151
    %171 = vst [vmem:[#allocation2 + $0x8] sm:$0xff] %v153
    %172 = vst [vmem:[#allocation2 + $0x10] sm:$0xff] %v156
    %173 = vst [vmem:[#allocation2 + $0x18] sm:$0xff] %v158
    %174 = vst [vmem:[#allocation2 + $0x20] sm:$0xff] %v161
    %175 = vst [vmem:[#allocation2 + $0x28] sm:$0xff] %v163
    %176 = vst [vmem:[#allocation2 + $0x30] sm:$0xff] %v166
    %177 = vst [vmem:[#allocation2 + $0x38] sm:$0xff] %v168
    %v178 = vld [vmem:[#allocation2] sm:$0xff]
    %v179 = vld [vmem:[%s2] sm:$0xf]
    %v180 = vld [vmem:[%s2 + $0x4] sm:$0xf]
    %v181 = vld [vmem:[%s2 + $0x8] sm:$0xf]
    %v182 = vld [vmem:[%s2 + $0xc] sm:$0xf]
    %v183 = vld [vmem:[%s2 + $0x10] sm:$0xf]
    %v184 = vld [vmem:[%s2 + $0x14] sm:$0xf]
    %v185 = vld [vmem:[%s2 + $0x18] sm:$0xf]
    %v186 = vld [vmem:[%s2 + $0x1c] sm:$0xf]
    %v187 = vld [vmem:[%s2 + $0x20] sm:$0xf]
    %v188 = vld [vmem:[%s2 + $0x24] sm:$0xf]
    %v189 = vld [vmem:[%s2 + $0x28] sm:$0xf]
    %v190 = vld [vmem:[%s2 + $0x2c] sm:$0xf]
    %v191 = vld [vmem:[%s2 + $0x30] sm:$0xf]
    %v192 = vld [vmem:[%s2 + $0x34] sm:$0xf]
    %v193 = vld [vmem:[%s2 + $0x38] sm:$0xf]
    %v194 = vld [vmem:[%s2 + $0x3c] sm:$0xf]
    %v211 = vunpack.c.l.b16 %v179
    %v212 = vunpack.c.l.b16 %v180
    %v213 = vunpack.c.l.b16 %v181
    %v214 = vunpack.c.l.b16 %v182
    %v215 = vunpack.c.l.b16 %v183
    %v216 = vunpack.c.l.b16 %v184
    %v217 = vunpack.c.l.b16 %v185
    %v218 = vunpack.c.l.b16 %v186
    %v219 = vunpack.c.l.b16 %v187
    %v220 = vunpack.c.l.b16 %v188
    %v221 = vunpack.c.l.b16 %v189
    %v222 = vunpack.c.l.b16 %v190
    %v223 = vunpack.c.l.b16 %v191
    %v224 = vunpack.c.l.b16 %v192
    %v225 = vunpack.c.l.b16 %v193
    %v226 = vunpack.c.l.b16 %v194
    %v227 = vpack.c.b16 %v212, %v211
    %v228 = vpack.c.b16 %v214, %v213
    %v229 = vpack.c.b16 %v216, %v215
    %v230 = vpack.c.b16 %v218, %v217
    %v231 = vpack.c.b16 %v220, %v219
    %v232 = vpack.c.b16 %v222, %v221
    %v233 = vpack.c.b16 %v224, %v223
    %v234 = vpack.c.b16 %v226, %v225
    %243 = vmatpush.bf16.msra.mxu0 %v234
    %244 = vmatpush.bf16.msra.mxu0 %v233
    %245 = vmatpush.bf16.msra.mxu0 %v232
    %246 = vmatpush.bf16.msra.mxu0 %v231
    %247 = vmatpush.bf16.msra.mxu0 %v230
    %248 = vmatpush.bf16.msra.mxu0 %v229
    %249 = vmatpush.bf16.msra.mxu0 %v228
    %250 = vmatpush.bf16.msra.mxu0 %v227
    %251 = vmatmul.bf16.gmra.mxu0 0
    %v252 = vpop.f32.mrf.mxu0
    %v253 = vadd.f32 0.0, %v252
    %v254 = vpop.f32.mrf.mxu0
    %255 = vdwg.mxu0
    %v256 = vadd.f32 %v178, %v253
    %v257 = vtanh.pop %v256
    %v258 = vmul.f32 %v257, %v85
    %v259 = vadd.f32 %v258, %v86
    %260 = vrot.lane.b32.xlu0 %v259, 96
    %v261 = vpop.permute.xlu0 %260
    %262 = vrot.lane.b32.xlu0 %v259, 64
    %v263 = vpop.permute.xlu0 %262
    %264 = vrot.lane.b32.xlu0 %v259, 32
    %v265 = vpop.permute.xlu0 %264
    %v266 = vmul.f32 %v261, 0.0
    %v267 = vmul.f32 %v259, %v263
    %v268 = vadd.f32 %v266, %v267
    %v269 = vsel %vm87, %v268, 0.0
    %v270 = vtanh.pop %v269
    %v271 = vmul.f32 %v265, %v270
    %v272 = vpack.c.bf16 %v271, %v271
    %273 = vst [vmem:[#allocation3] sm:$0xf] %v272
    %s274 = scalar_lea.vmem [#allocation2], 8
    %v275 = vld [vmem:[%s274] sm:$0xff]
    %v276 = vld [vmem:[%s2] sm:$0xf]
    %v277 = vld [vmem:[%s2 + $0x4] sm:$0xf]
    %v278 = vld [vmem:[%s2 + $0x8] sm:$0xf]
    %v279 = vld [vmem:[%s2 + $0xc] sm:$0xf]
    %v280 = vld [vmem:[%s2 + $0x10] sm:$0xf]
    %v281 = vld [vmem:[%s2 + $0x14] sm:$0xf]
    %v282 = vld [vmem:[%s2 + $0x18] sm:$0xf]
    %v283 = vld [vmem:[%s2 + $0x1c] sm:$0xf]
    %v284 = vld [vmem:[%s2 + $0x20] sm:$0xf]
    %v285 = vld [vmem:[%s2 + $0x24] sm:$0xf]
    %v286 = vld [vmem:[%s2 + $0x28] sm:$0xf]
    %v287 = vld [vmem:[%s2 + $0x2c] sm:$0xf]
    %v288 = vld [vmem:[%s2 + $0x30] sm:$0xf]
    %v289 = vld [vmem:[%s2 + $0x34] sm:$0xf]
    %v290 = vld [vmem:[%s2 + $0x38] sm:$0xf]
    %v291 = vld [vmem:[%s2 + $0x3c] sm:$0xf]
    %v308 = vunpack.c.l.b16 %v276
    %v309 = vunpack.c.l.b16 %v277
    %v310 = vunpack.c.l.b16 %v278
    %v311 = vunpack.c.l.b16 %v279
    %v312 = vunpack.c.l.b16 %v280
    %v313 = vunpack.c.l.b16 %v281
    %v314 = vunpack.c.l.b16 %v282
    %v315 = vunpack.c.l.b16 %v283
    %v316 = vunpack.c.l.b16 %v284
    %v317 = vunpack.c.l.b16 %v285
    %v318 = vunpack.c.l.b16 %v286
    %v319 = vunpack.c.l.b16 %v287
    %v320 = vunpack.c.l.b16 %v288
    %v321 = vunpack.c.l.b16 %v289
    %v322 = vunpack.c.l.b16 %v290
    %v323 = vunpack.c.l.b16 %v291
    %v324 = vpack.c.b16 %v309, %v308
    %v325 = vpack.c.b16 %v311, %v310
    %v326 = vpack.c.b16 %v313, %v312
    %v327 = vpack.c.b16 %v315, %v314
    %v328 = vpack.c.b16 %v317, %v316
    %v329 = vpack.c.b16 %v319, %v318
    %v330 = vpack.c.b16 %v321, %v320
    %v331 = vpack.c.b16 %v323, %v322
    %340 = vmatpush.bf16.msra.mxu0 %v331
    %341 = vmatpush.bf16.msra.mxu0 %v330
    %342 = vmatpush.bf16.msra.mxu0 %v329
    %343 = vmatpush.bf16.msra.mxu0 %v328
    %344 = vmatpush.bf16.msra.mxu0 %v327
    %345 = vmatpush.bf16.msra.mxu0 %v326
    %346 = vmatpush.bf16.msra.mxu0 %v325
    %347 = vmatpush.bf16.msra.mxu0 %v324
    %348 = vmatmul.bf16.gmra.mxu0 %v272
    %v349 = vpop.f32.mrf.mxu0
    %v350 = vadd.f32 0.0, %v349
    %v351 = vpop.f32.mrf.mxu0
    %352 = vdwg.mxu0
    %v353 = vadd.f32 %v275, %v350
    %v354 = vtanh.pop %v353
    %v355 = vmul.f32 %v354, %v85
    %v356 = vadd.f32 %v355, %v86
    %357 = vrot.lane.b32.xlu0 %v356, 96
    %v358 = vpop.permute.xlu0 %357
    %359 = vrot.lane.b32.xlu0 %v356, 64
    %v360 = vpop.permute.xlu0 %359
    %361 = vrot.lane.b32.xlu0 %v356, 32
    %v362 = vpop.permute.xlu0 %361
    %v363 = vmul.f32 %v358, %v269
    %v364 = vmul.f32 %v356, %v360
    %v365 = vadd.f32 %v363, %v364
    %v366 = vsel %vm87, %v365, 0.0
    %v367 = vtanh.pop %v366
    %v368 = vmul.f32 %v362, %v367
    %v369 = vpack.c.bf16 %v368, %v368
    %s370 = scalar_lea.vmem [#allocation3], 4
    %371 = vst [vmem:[%s370] sm:$0xf] %v369
    %s372 = scalar_lea.vmem [#allocation2], 16
    %v373 = vld [vmem:[%s372] sm:$0xff]
    %v374 = vld [vmem:[%s2] sm:$0xf]
    %v375 = vld [vmem:[%s2 + $0x4] sm:$0xf]
    %v376 = vld [vmem:[%s2 + $0x8] sm:$0xf]
    %v377 = vld [vmem:[%s2 + $0xc] sm:$0xf]
    %v378 = vld [vmem:[%s2 + $0x10] sm:$0xf]
    %v379 = vld [vmem:[%s2 + $0x14] sm:$0xf]
    %v380 = vld [vmem:[%s2 + $0x18] sm:$0xf]
    %v381 = vld [vmem:[%s2 + $0x1c] sm:$0xf]
    %v382 = vld [vmem:[%s2 + $0x20] sm:$0xf]
    %v383 = vld [vmem:[%s2 + $0x24] sm:$0xf]
    %v384 = vld [vmem:[%s2 + $0x28] sm:$0xf]
    %v385 = vld [vmem:[%s2 + $0x2c] sm:$0xf]
    %v386 = vld [vmem:[%s2 + $0x30] sm:$0xf]
    %v387 = vld [vmem:[%s2 + $0x34] sm:$0xf]
    %v388 = vld [vmem:[%s2 + $0x38] sm:$0xf]
    %v389 = vld [vmem:[%s2 + $0x3c] sm:$0xf]
    %v406 = vunpack.c.l.b16 %v374
    %v407 = vunpack.c.l.b16 %v375
    %v408 = vunpack.c.l.b16 %v376
    %v409 = vunpack.c.l.b16 %v377
    %v410 = vunpack.c.l.b16 %v378
    %v411 = vunpack.c.l.b16 %v379
    %v412 = vunpack.c.l.b16 %v380
    %v413 = vunpack.c.l.b16 %v381
    %v414 = vunpack.c.l.b16 %v382
    %v415 = vunpack.c.l.b16 %v383
    %v416 = vunpack.c.l.b16 %v384
    %v417 = vunpack.c.l.b16 %v385
    %v418 = vunpack.c.l.b16 %v386
    %v419 = vunpack.c.l.b16 %v387
    %v420 = vunpack.c.l.b16 %v388
    %v421 = vunpack.c.l.b16 %v389
    %v422 = vpack.c.b16 %v407, %v406
    %v423 = vpack.c.b16 %v409, %v408
    %v424 = vpack.c.b16 %v411, %v410
    %v425 = vpack.c.b16 %v413, %v412
    %v426 = vpack.c.b16 %v415, %v414
    %v427 = vpack.c.b16 %v417, %v416
    %v428 = vpack.c.b16 %v419, %v418
    %v429 = vpack.c.b16 %v421, %v420
    %438 = vmatpush.bf16.msra.mxu0 %v429
    %439 = vmatpush.bf16.msra.mxu0 %v428
    %440 = vmatpush.bf16.msra.mxu0 %v427
    %441 = vmatpush.bf16.msra.mxu0 %v426
    %442 = vmatpush.bf16.msra.mxu0 %v425
    %443 = vmatpush.bf16.msra.mxu0 %v424
    %444 = vmatpush.bf16.msra.mxu0 %v423
    %445 = vmatpush.bf16.msra.mxu0 %v422
    %446 = vmatmul.bf16.gmra.mxu0 %v369
    %v447 = vpop.f32.mrf.mxu0
    %v448 = vadd.f32 0.0, %v447
    %v449 = vpop.f32.mrf.mxu0
    %450 = vdwg.mxu0
    %v451 = vadd.f32 %v373, %v448
    %v452 = vtanh.pop %v451
    %v453 = vmul.f32 %v452, %v85
    %v454 = vadd.f32 %v453, %v86
    %455 = vrot.lane.b32.xlu0 %v454, 96
    %v456 = vpop.permute.xlu0 %455
    %457 = vrot.lane.b32.xlu0 %v454, 64
    %v458 = vpop.permute.xlu0 %457
    %459 = vrot.lane.b32.xlu0 %v454, 32
    %v460 = vpop.permute.xlu0 %459
    %v461 = vmul.f32 %v456, %v366
    %v462 = vmul.f32 %v454, %v458
    %v463 = vadd.f32 %v461, %v462
    %v464 = vsel %vm87, %v463, 0.0
    %v465 = vtanh.pop %v464
    %v466 = vmul.f32 %v460, %v465
    %v467 = vpack.c.bf16 %v466, %v466
    %s468 = scalar_lea.vmem [#allocation3], 8
    %469 = vst [vmem:[%s468] sm:$0xf] %v467
    %s470 = scalar_lea.vmem [#allocation2], 24
    %v471 = vld [vmem:[%s470] sm:$0xff]
    %v472 = vld [vmem:[%s2] sm:$0xf]
    %v473 = vld [vmem:[%s2 + $0x4] sm:$0xf]
    %v474 = vld [vmem:[%s2 + $0x8] sm:$0xf]
    %v475 = vld [vmem:[%s2 + $0xc] sm:$0xf]
    %v476 = vld [vmem:[%s2 + $0x10] sm:$0xf]
    %v477 = vld [vmem:[%s2 + $0x14] sm:$0xf]
    %v478 = vld [vmem:[%s2 + $0x18] sm:$0xf]
    %v479 = vld [vmem:[%s2 + $0x1c] sm:$0xf]
    %v480 = vld [vmem:[%s2 + $0x20] sm:$0xf]
    %v481 = vld [vmem:[%s2 + $0x24] sm:$0xf]
    %v482 = vld [vmem:[%s2 + $0x28] sm:$0xf]
    %v483 = vld [vmem:[%s2 + $0x2c] sm:$0xf]
    %v484 = vld [vmem:[%s2 + $0x30] sm:$0xf]
    %v485 = vld [vmem:[%s2 + $0x34] sm:$0xf]
    %v486 = vld [vmem:[%s2 + $0x38] sm:$0xf]
    %v487 = vld [vmem:[%s2 + $0x3c] sm:$0xf]
    %v504 = vunpack.c.l.b16 %v472
    %v505 = vunpack.c.l.b16 %v473
    %v506 = vunpack.c.l.b16 %v474
    %v507 = vunpack.c.l.b16 %v475
    %v508 = vunpack.c.l.b16 %v476
    %v509 = vunpack.c.l.b16 %v477
    %v510 = vunpack.c.l.b16 %v478
    %v511 = vunpack.c.l.b16 %v479
    %v512 = vunpack.c.l.b16 %v480
    %v513 = vunpack.c.l.b16 %v481
    %v514 = vunpack.c.l.b16 %v482
    %v515 = vunpack.c.l.b16 %v483
    %v516 = vunpack.c.l.b16 %v484
    %v517 = vunpack.c.l.b16 %v485
    %v518 = vunpack.c.l.b16 %v486
    %v519 = vunpack.c.l.b16 %v487
    %v520 = vpack.c.b16 %v505, %v504
    %v521 = vpack.c.b16 %v507, %v506
    %v522 = vpack.c.b16 %v509, %v508
    %v523 = vpack.c.b16 %v511, %v510
    %v524 = vpack.c.b16 %v513, %v512
    %v525 = vpack.c.b16 %v515, %v514
    %v526 = vpack.c.b16 %v517, %v516
    %v527 = vpack.c.b16 %v519, %v518
    %536 = vmatpush.bf16.msra.mxu0 %v527
    %537 = vmatpush.bf16.msra.mxu0 %v526
    %538 = vmatpush.bf16.msra.mxu0 %v525
    %539 = vmatpush.bf16.msra.mxu0 %v524
    %540 = vmatpush.bf16.msra.mxu0 %v523
    %541 = vmatpush.bf16.msra.mxu0 %v522
    %542 = vmatpush.bf16.msra.mxu0 %v521
    %543 = vmatpush.bf16.msra.mxu0 %v520
    %544 = vmatmul.bf16.gmra.mxu0 %v467
    %v545 = vpop.f32.mrf.mxu0
    %v546 = vadd.f32 0.0, %v545
    %v547 = vpop.f32.mrf.mxu0
    %548 = vdwg.mxu0
    %v549 = vadd.f32 %v471, %v546
    %v550 = vtanh.pop %v549
    %v551 = vmul.f32 %v550, %v85
    %v552 = vadd.f32 %v551, %v86
    %553 = vrot.lane.b32.xlu0 %v552, 96
    %v554 = vpop.permute.xlu0 %553
    %555 = vrot.lane.b32.xlu0 %v552, 64
    %v556 = vpop.permute.xlu0 %555
    %557 = vrot.lane.b32.xlu0 %v552, 32
    %v558 = vpop.permute.xlu0 %557
    %v559 = vmul.f32 %v554, %v464
    %v560 = vmul.f32 %v552, %v556
    %v561 = vadd.f32 %v559, %v560
    %v562 = vsel %vm87, %v561, 0.0
    %v563 = vtanh.pop %v562
    %v564 = vmul.f32 %v558, %v563
    %v565 = vpack.c.bf16 %v564, %v564
    %s566 = scalar_lea.vmem [#allocation3], 12
    %567 = vst [vmem:[%s566] sm:$0xf] %v565
    %s568 = scalar_lea.vmem [#allocation2], 32
    %v569 = vld [vmem:[%s568] sm:$0xff]
    %v570 = vld [vmem:[%s2] sm:$0xf]
    %v571 = vld [vmem:[%s2 + $0x4] sm:$0xf]
    %v572 = vld [vmem:[%s2 + $0x8] sm:$0xf]
    %v573 = vld [vmem:[%s2 + $0xc] sm:$0xf]
    %v574 = vld [vmem:[%s2 + $0x10] sm:$0xf]
    %v575 = vld [vmem:[%s2 + $0x14] sm:$0xf]
    %v576 = vld [vmem:[%s2 + $0x18] sm:$0xf]
    %v577 = vld [vmem:[%s2 + $0x1c] sm:$0xf]
    %v578 = vld [vmem:[%s2 + $0x20] sm:$0xf]
    %v579 = vld [vmem:[%s2 + $0x24] sm:$0xf]
    %v580 = vld [vmem:[%s2 + $0x28] sm:$0xf]
    %v581 = vld [vmem:[%s2 + $0x2c] sm:$0xf]
    %v582 = vld [vmem:[%s2 + $0x30] sm:$0xf]
    %v583 = vld [vmem:[%s2 + $0x34] sm:$0xf]
    %v584 = vld [vmem:[%s2 + $0x38] sm:$0xf]
    %v585 = vld [vmem:[%s2 + $0x3c] sm:$0xf]
    %v602 = vunpack.c.l.b16 %v570
    %v603 = vunpack.c.l.b16 %v571
    %v604 = vunpack.c.l.b16 %v572
    %v605 = vunpack.c.l.b16 %v573
    %v606 = vunpack.c.l.b16 %v574
    %v607 = vunpack.c.l.b16 %v575
    %v608 = vunpack.c.l.b16 %v576
    %v609 = vunpack.c.l.b16 %v577
    %v610 = vunpack.c.l.b16 %v578
    %v611 = vunpack.c.l.b16 %v579
    %v612 = vunpack.c.l.b16 %v580
    %v613 = vunpack.c.l.b16 %v581
    %v614 = vunpack.c.l.b16 %v582
    %v615 = vunpack.c.l.b16 %v583
    %v616 = vunpack.c.l.b16 %v584
    %v617 = vunpack.c.l.b16 %v585
    %v618 = vpack.c.b16 %v603, %v602
    %v619 = vpack.c.b16 %v605, %v604
    %v620 = vpack.c.b16 %v607, %v606
    %v621 = vpack.c.b16 %v609, %v608
    %v622 = vpack.c.b16 %v611, %v610
    %v623 = vpack.c.b16 %v613, %v612
    %v624 = vpack.c.b16 %v615, %v614
    %v625 = vpack.c.b16 %v617, %v616
    %634 = vmatpush.bf16.msra.mxu0 %v625
    %635 = vmatpush.bf16.msra.mxu0 %v624
    %636 = vmatpush.bf16.msra.mxu0 %v623
    %637 = vmatpush.bf16.msra.mxu0 %v622
    %638 = vmatpush.bf16.msra.mxu0 %v621
    %639 = vmatpush.bf16.msra.mxu0 %v620
    %640 = vmatpush.bf16.msra.mxu0 %v619
    %641 = vmatpush.bf16.msra.mxu0 %v618
    %642 = vmatmul.bf16.gmra.mxu0 %v565
    %v643 = vpop.f32.mrf.mxu0
    %v644 = vadd.f32 0.0, %v643
    %v645 = vpop.f32.mrf.mxu0
    %646 = vdwg.mxu0
    %v647 = vadd.f32 %v569, %v644
    %v648 = vtanh.pop %v647
    %v649 = vmul.f32 %v648, %v85
    %v650 = vadd.f32 %v649, %v86
    %651 = vrot.lane.b32.xlu0 %v650, 96
    %v652 = vpop.permute.xlu0 %651
    %653 = vrot.lane.b32.xlu0 %v650, 64
    %v654 = vpop.permute.xlu0 %653
    %655 = vrot.lane.b32.xlu0 %v650, 32
    %v656 = vpop.permute.xlu0 %655
    %v657 = vmul.f32 %v652, %v562
    %v658 = vmul.f32 %v650, %v654
    %v659 = vadd.f32 %v657, %v658
    %v660 = vsel %vm87, %v659, 0.0
    %v661 = vtanh.pop %v660
    %v662 = vmul.f32 %v656, %v661
    %v663 = vpack.c.bf16 %v662, %v662
    %s664 = scalar_lea.vmem [#allocation3], 16
    %665 = vst [vmem:[%s664] sm:$0xf] %v663
    %s666 = scalar_lea.vmem [#allocation2], 40
    %v667 = vld [vmem:[%s666] sm:$0xff]
    %v668 = vld [vmem:[%s2] sm:$0xf]
    %v669 = vld [vmem:[%s2 + $0x4] sm:$0xf]
    %v670 = vld [vmem:[%s2 + $0x8] sm:$0xf]
    %v671 = vld [vmem:[%s2 + $0xc] sm:$0xf]
    %v672 = vld [vmem:[%s2 + $0x10] sm:$0xf]
    %v673 = vld [vmem:[%s2 + $0x14] sm:$0xf]
    %v674 = vld [vmem:[%s2 + $0x18] sm:$0xf]
    %v675 = vld [vmem:[%s2 + $0x1c] sm:$0xf]
    %v676 = vld [vmem:[%s2 + $0x20] sm:$0xf]
    %v677 = vld [vmem:[%s2 + $0x24] sm:$0xf]
    %v678 = vld [vmem:[%s2 + $0x28] sm:$0xf]
    %v679 = vld [vmem:[%s2 + $0x2c] sm:$0xf]
    %v680 = vld [vmem:[%s2 + $0x30] sm:$0xf]
    %v681 = vld [vmem:[%s2 + $0x34] sm:$0xf]
    %v682 = vld [vmem:[%s2 + $0x38] sm:$0xf]
    %v683 = vld [vmem:[%s2 + $0x3c] sm:$0xf]
    %v700 = vunpack.c.l.b16 %v668
    %v701 = vunpack.c.l.b16 %v669
    %v702 = vunpack.c.l.b16 %v670
    %v703 = vunpack.c.l.b16 %v671
    %v704 = vunpack.c.l.b16 %v672
    %v705 = vunpack.c.l.b16 %v673
    %v706 = vunpack.c.l.b16 %v674
    %v707 = vunpack.c.l.b16 %v675
    %v708 = vunpack.c.l.b16 %v676
    %v709 = vunpack.c.l.b16 %v677
    %v710 = vunpack.c.l.b16 %v678
    %v711 = vunpack.c.l.b16 %v679
    %v712 = vunpack.c.l.b16 %v680
    %v713 = vunpack.c.l.b16 %v681
    %v714 = vunpack.c.l.b16 %v682
    %v715 = vunpack.c.l.b16 %v683
    %v716 = vpack.c.b16 %v701, %v700
    %v717 = vpack.c.b16 %v703, %v702
    %v718 = vpack.c.b16 %v705, %v704
    %v719 = vpack.c.b16 %v707, %v706
    %v720 = vpack.c.b16 %v709, %v708
    %v721 = vpack.c.b16 %v711, %v710
    %v722 = vpack.c.b16 %v713, %v712
    %v723 = vpack.c.b16 %v715, %v714
    %732 = vmatpush.bf16.msra.mxu0 %v723
    %733 = vmatpush.bf16.msra.mxu0 %v722
    %734 = vmatpush.bf16.msra.mxu0 %v721
    %735 = vmatpush.bf16.msra.mxu0 %v720
    %736 = vmatpush.bf16.msra.mxu0 %v719
    %737 = vmatpush.bf16.msra.mxu0 %v718
    %738 = vmatpush.bf16.msra.mxu0 %v717
    %739 = vmatpush.bf16.msra.mxu0 %v716
    %740 = vmatmul.bf16.gmra.mxu0 %v663
    %v741 = vpop.f32.mrf.mxu0
    %v742 = vadd.f32 0.0, %v741
    %v743 = vpop.f32.mrf.mxu0
    %744 = vdwg.mxu0
    %v745 = vadd.f32 %v667, %v742
    %v746 = vtanh.pop %v745
    %v747 = vmul.f32 %v746, %v85
    %v748 = vadd.f32 %v747, %v86
    %749 = vrot.lane.b32.xlu0 %v748, 96
    %v750 = vpop.permute.xlu0 %749
    %751 = vrot.lane.b32.xlu0 %v748, 64
    %v752 = vpop.permute.xlu0 %751
    %753 = vrot.lane.b32.xlu0 %v748, 32
    %v754 = vpop.permute.xlu0 %753
    %v755 = vmul.f32 %v750, %v660
    %v756 = vmul.f32 %v748, %v752
    %v757 = vadd.f32 %v755, %v756
    %v758 = vsel %vm87, %v757, 0.0
    %v759 = vtanh.pop %v758
    %v760 = vmul.f32 %v754, %v759
    %v761 = vpack.c.bf16 %v760, %v760
    %s762 = scalar_lea.vmem [#allocation3], 20
    %763 = vst [vmem:[%s762] sm:$0xf] %v761
    %s764 = scalar_lea.vmem [#allocation2], 48
    %v765 = vld [vmem:[%s764] sm:$0xff]
    %v766 = vld [vmem:[%s2] sm:$0xf]
    %v767 = vld [vmem:[%s2 + $0x4] sm:$0xf]
    %v768 = vld [vmem:[%s2 + $0x8] sm:$0xf]
    %v769 = vld [vmem:[%s2 + $0xc] sm:$0xf]
    %v770 = vld [vmem:[%s2 + $0x10] sm:$0xf]
    %v771 = vld [vmem:[%s2 + $0x14] sm:$0xf]
    %v772 = vld [vmem:[%s2 + $0x18] sm:$0xf]
    %v773 = vld [vmem:[%s2 + $0x1c] sm:$0xf]
    %v774 = vld [vmem:[%s2 + $0x20] sm:$0xf]
    %v775 = vld [vmem:[%s2 + $0x24] sm:$0xf]
    %v776 = vld [vmem:[%s2 + $0x28] sm:$0xf]
    %v777 = vld [vmem:[%s2 + $0x2c] sm:$0xf]
    %v778 = vld [vmem:[%s2 + $0x30] sm:$0xf]
    %v779 = vld [vmem:[%s2 + $0x34] sm:$0xf]
    %v780 = vld [vmem:[%s2 + $0x38] sm:$0xf]
    %v781 = vld [vmem:[%s2 + $0x3c] sm:$0xf]
    %v798 = vunpack.c.l.b16 %v766
    %v799 = vunpack.c.l.b16 %v767
    %v800 = vunpack.c.l.b16 %v768
    %v801 = vunpack.c.l.b16 %v769
    %v802 = vunpack.c.l.b16 %v770
    %v803 = vunpack.c.l.b16 %v771
    %v804 = vunpack.c.l.b16 %v772
    %v805 = vunpack.c.l.b16 %v773
    %v806 = vunpack.c.l.b16 %v774
    %v807 = vunpack.c.l.b16 %v775
    %v808 = vunpack.c.l.b16 %v776
    %v809 = vunpack.c.l.b16 %v777
    %v810 = vunpack.c.l.b16 %v778
    %v811 = vunpack.c.l.b16 %v779
    %v812 = vunpack.c.l.b16 %v780
    %v813 = vunpack.c.l.b16 %v781
    %v814 = vpack.c.b16 %v799, %v798
    %v815 = vpack.c.b16 %v801, %v800
    %v816 = vpack.c.b16 %v803, %v802
    %v817 = vpack.c.b16 %v805, %v804
    %v818 = vpack.c.b16 %v807, %v806
    %v819 = vpack.c.b16 %v809, %v808
    %v820 = vpack.c.b16 %v811, %v810
    %v821 = vpack.c.b16 %v813, %v812
    %830 = vmatpush.bf16.msra.mxu0 %v821
    %831 = vmatpush.bf16.msra.mxu0 %v820
    %832 = vmatpush.bf16.msra.mxu0 %v819
    %833 = vmatpush.bf16.msra.mxu0 %v818
    %834 = vmatpush.bf16.msra.mxu0 %v817
    %835 = vmatpush.bf16.msra.mxu0 %v816
    %836 = vmatpush.bf16.msra.mxu0 %v815
    %837 = vmatpush.bf16.msra.mxu0 %v814
    %838 = vmatmul.bf16.gmra.mxu0 %v761
    %v839 = vpop.f32.mrf.mxu0
    %v840 = vadd.f32 0.0, %v839
    %v841 = vpop.f32.mrf.mxu0
    %842 = vdwg.mxu0
    %v843 = vadd.f32 %v765, %v840
    %v844 = vtanh.pop %v843
    %v845 = vmul.f32 %v844, %v85
    %v846 = vadd.f32 %v845, %v86
    %847 = vrot.lane.b32.xlu0 %v846, 96
    %v848 = vpop.permute.xlu0 %847
    %849 = vrot.lane.b32.xlu0 %v846, 64
    %v850 = vpop.permute.xlu0 %849
    %851 = vrot.lane.b32.xlu0 %v846, 32
    %v852 = vpop.permute.xlu0 %851
    %v853 = vmul.f32 %v848, %v758
    %v854 = vmul.f32 %v846, %v850
    %v855 = vadd.f32 %v853, %v854
    %v856 = vsel %vm87, %v855, 0.0
    %v857 = vtanh.pop %v856
    %v858 = vmul.f32 %v852, %v857
    %v859 = vpack.c.bf16 %v858, %v858
    %s860 = scalar_lea.vmem [#allocation3], 24
    %861 = vst [vmem:[%s860] sm:$0xf] %v859
    %s862 = scalar_lea.vmem [#allocation2], 56
    %v863 = vld [vmem:[%s862] sm:$0xff]
    %v864 = vld [vmem:[%s2] sm:$0xf]
    %v865 = vld [vmem:[%s2 + $0x4] sm:$0xf]
    %v866 = vld [vmem:[%s2 + $0x8] sm:$0xf]
    %v867 = vld [vmem:[%s2 + $0xc] sm:$0xf]
    %v868 = vld [vmem:[%s2 + $0x10] sm:$0xf]
    %v869 = vld [vmem:[%s2 + $0x14] sm:$0xf]
    %v870 = vld [vmem:[%s2 + $0x18] sm:$0xf]
    %v871 = vld [vmem:[%s2 + $0x1c] sm:$0xf]
    %v872 = vld [vmem:[%s2 + $0x20] sm:$0xf]
    %v873 = vld [vmem:[%s2 + $0x24] sm:$0xf]
    %v874 = vld [vmem:[%s2 + $0x28] sm:$0xf]
    %v875 = vld [vmem:[%s2 + $0x2c] sm:$0xf]
    %v876 = vld [vmem:[%s2 + $0x30] sm:$0xf]
    %v877 = vld [vmem:[%s2 + $0x34] sm:$0xf]
    %v878 = vld [vmem:[%s2 + $0x38] sm:$0xf]
    %v879 = vld [vmem:[%s2 + $0x3c] sm:$0xf]
    %v896 = vunpack.c.l.b16 %v864
    %v897 = vunpack.c.l.b16 %v865
    %v898 = vunpack.c.l.b16 %v866
    %v899 = vunpack.c.l.b16 %v867
    %v900 = vunpack.c.l.b16 %v868
    %v901 = vunpack.c.l.b16 %v869
    %v902 = vunpack.c.l.b16 %v870
    %v903 = vunpack.c.l.b16 %v871
    %v904 = vunpack.c.l.b16 %v872
    %v905 = vunpack.c.l.b16 %v873
    %v906 = vunpack.c.l.b16 %v874
    %v907 = vunpack.c.l.b16 %v875
    %v908 = vunpack.c.l.b16 %v876
    %v909 = vunpack.c.l.b16 %v877
    %v910 = vunpack.c.l.b16 %v878
    %v911 = vunpack.c.l.b16 %v879
    %v912 = vpack.c.b16 %v897, %v896
    %v913 = vpack.c.b16 %v899, %v898
    %v914 = vpack.c.b16 %v901, %v900
    %v915 = vpack.c.b16 %v903, %v902
    %v916 = vpack.c.b16 %v905, %v904
    %v917 = vpack.c.b16 %v907, %v906
    %v918 = vpack.c.b16 %v909, %v908
    %v919 = vpack.c.b16 %v911, %v910
    %928 = vmatpush.bf16.msra.mxu0 %v919
    %929 = vmatpush.bf16.msra.mxu0 %v918
    %930 = vmatpush.bf16.msra.mxu0 %v917
    %931 = vmatpush.bf16.msra.mxu0 %v916
    %932 = vmatpush.bf16.msra.mxu0 %v915
    %933 = vmatpush.bf16.msra.mxu0 %v914
    %934 = vmatpush.bf16.msra.mxu0 %v913
    %935 = vmatpush.bf16.msra.mxu0 %v912
    %936 = vmatmul.bf16.gmra.mxu0 %v859
    %v937 = vpop.f32.mrf.mxu0
    %v938 = vadd.f32 0.0, %v937
    %v939 = vpop.f32.mrf.mxu0
    %940 = vdwg.mxu0
    %v941 = vadd.f32 %v863, %v938
    %v942 = vtanh.pop %v941
    %v943 = vmul.f32 %v942, %v85
    %v944 = vadd.f32 %v943, %v86
    %945 = vrot.lane.b32.xlu0 %v944, 96
    %v946 = vpop.permute.xlu0 %945
    %947 = vrot.lane.b32.xlu0 %v944, 64
    %v948 = vpop.permute.xlu0 %947
    %949 = vrot.lane.b32.xlu0 %v944, 32
    %v950 = vpop.permute.xlu0 %949
    %v951 = vmul.f32 %v946, %v856
    %v952 = vmul.f32 %v944, %v948
    %v953 = vadd.f32 %v951, %v952
    %v954 = vsel %vm87, %v953, 0.0
    %v955 = vtanh.pop %v954
    %v956 = vmul.f32 %v950, %v955
    %v957 = vpack.c.bf16 %v956, %v956
    %s958 = scalar_lea.vmem [#allocation3], 28
    %959 = vst [vmem:[%s958] sm:$0xf] %v957
    %v960 = vld [vmem:[#allocation3] sm:$0xf]
    %v961 = vld [vmem:[#allocation3 + $0x4] sm:$0xf]
    %v962 = vld [vmem:[#allocation3 + $0x8] sm:$0xf]
    %v963 = vld [vmem:[#allocation3 + $0xc] sm:$0xf]
    %v964 = vld [vmem:[#allocation3 + $0x10] sm:$0xf]
    %v965 = vld [vmem:[#allocation3 + $0x14] sm:$0xf]
    %v966 = vld [vmem:[#allocation3 + $0x18] sm:$0xf]
    %v967 = vld [vmem:[#allocation3 + $0x1c] sm:$0xf]
    %v968 = vld [vmem:[#allocation4] sm:$0xf]
    %v969 = vld [vmem:[#allocation4 + $0x4] sm:$0xf]
    %v970 = vld [vmem:[#allocation4 + $0x8] sm:$0xf]
    %v971 = vld [vmem:[#allocation4 + $0xc] sm:$0xf]
    %v972 = vld [vmem:[#allocation4 + $0x10] sm:$0xf]
    %v973 = vld [vmem:[#allocation4 + $0x14] sm:$0xf]
    %v974 = vld [vmem:[#allocation4 + $0x18] sm:$0xf]
    %v975 = vld [vmem:[#allocation4 + $0x1c] sm:$0xf]
    %v976 = vld [vmem:[#allocation4 + $0x20] sm:$0xf]
    %v977 = vld [vmem:[#allocation4 + $0x24] sm:$0xf]
    %v978 = vld [vmem:[#allocation4 + $0x28] sm:$0xf]
    %v979 = vld [vmem:[#allocation4 + $0x2c] sm:$0xf]
    %v980 = vld [vmem:[#allocation4 + $0x30] sm:$0xf]
    %v981 = vld [vmem:[#allocation4 + $0x34] sm:$0xf]
    %v982 = vld [vmem:[#allocation4 + $0x38] sm:$0xf]
    %v983 = vld [vmem:[#allocation4 + $0x3c] sm:$0xf]
    %v984 = vld [vmem:[%s6] sm:$0x1]
    %v986 = vperm.slane %v984, 0
    %v996 = vunpack.c.l.b16 %v960
    %v997 = vunpack.c.l.b16 %v961
    %v998 = vunpack.c.l.b16 %v962
    %v999 = vunpack.c.l.b16 %v963
    %v1000 = vunpack.c.l.b16 %v964
    %v1001 = vunpack.c.l.b16 %v965
    %v1002 = vunpack.c.l.b16 %v966
    %v1003 = vunpack.c.l.b16 %v967
    %v1004 = vpack.c.b16 %v997, %v996
    %v1005 = vpack.c.b16 %v999, %v998
    %v1006 = vpack.c.b16 %v1001, %v1000
    %v1007 = vpack.c.b16 %v1003, %v1002
    %v1028 = vunpack.c.l.b16 %v968
    %v1029 = vunpack.c.l.b16 %v969
    %v1030 = vunpack.c.l.b16 %v970
    %v1031 = vunpack.c.l.b16 %v971
    %v1032 = vunpack.c.l.b16 %v972
    %v1033 = vunpack.c.l.b16 %v973
    %v1034 = vunpack.c.l.b16 %v974
    %v1035 = vunpack.c.l.b16 %v975
    %v1036 = vunpack.c.l.b16 %v976
    %v1037 = vunpack.c.l.b16 %v977
    %v1038 = vunpack.c.l.b16 %v978
    %v1039 = vunpack.c.l.b16 %v979
    %v1040 = vunpack.c.l.b16 %v980
    %v1041 = vunpack.c.l.b16 %v981
    %v1042 = vunpack.c.l.b16 %v982
    %v1043 = vunpack.c.l.b16 %v983
    %v1044 = vpack.c.b16 %v1029, %v1028
    %v1045 = vpack.c.b16 %v1031, %v1030
    %v1046 = vpack.c.b16 %v1033, %v1032
    %v1047 = vpack.c.b16 %v1035, %v1034
    %v1048 = vpack.c.b16 %v1037, %v1036
    %v1049 = vpack.c.b16 %v1039, %v1038
    %v1050 = vpack.c.b16 %v1041, %v1040
    %v1051 = vpack.c.b16 %v1043, %v1042
    %1060 = vmatpush.bf16.msra.mxu0 %v1051
    %1061 = vmatpush.bf16.msra.mxu0 %v1050
    %1062 = vmatpush.bf16.msra.mxu0 %v1049
    %1063 = vmatpush.bf16.msra.mxu0 %v1048
    %1064 = vmatpush.bf16.msra.mxu0 %v1047
    %1065 = vmatpush.bf16.msra.mxu0 %v1046
    %1066 = vmatpush.bf16.msra.mxu0 %v1045
    %1067 = vmatpush.bf16.msra.mxu0 %v1044
    %1068 = vmatmul.bf16.gmra.mxu0 %v1004
    %v1069 = vpop.f32.mrf.mxu0
    %v1070 = vadd.f32 %v986, %v1069
    %v1071 = vpop.f32.mrf.mxu0
    %v1072 = vadd.f32 %v986, %v1071
    %1073 = vmatmul.bf16.gmra.mxu0 %v1005
    %v1074 = vpop.f32.mrf.mxu0
    %v1075 = vadd.f32 %v986, %v1074
    %v1076 = vpop.f32.mrf.mxu0
    %v1077 = vadd.f32 %v986, %v1076
    %1078 = vmatmul.bf16.gmra.mxu0 %v1006
    %v1079 = vpop.f32.mrf.mxu0
    %v1080 = vadd.f32 %v986, %v1079
    %v1081 = vpop.f32.mrf.mxu0
    %v1082 = vadd.f32 %v986, %v1081
    %1083 = vmatmul.bf16.gmra.mxu0 %v1007
    %v1084 = vpop.f32.mrf.mxu0
    %v1085 = vadd.f32 %v986, %v1084
    %v1086 = vpop.f32.mrf.mxu0
    %v1087 = vadd.f32 %v986, %v1086
    %1088 = vdwg.mxu0
    %1089 = vst [vmem:[#allocation2] sm:$0xff] %v1070
    %1090 = vst [vmem:[#allocation2 + $0x8] sm:$0xff] %v1072
    %1091 = vst [vmem:[#allocation2 + $0x10] sm:$0xff] %v1075
    %1092 = vst [vmem:[#allocation2 + $0x18] sm:$0xff] %v1077
    %1093 = vst [vmem:[#allocation2 + $0x20] sm:$0xff] %v1080
    %1094 = vst [vmem:[#allocation2 + $0x28] sm:$0xff] %v1082
    %1095 = vst [vmem:[#allocation2 + $0x30] sm:$0xff] %v1085
    %1096 = vst [vmem:[#allocation2 + $0x38] sm:$0xff] %v1087
    %v1097 = vld [vmem:[#allocation2] sm:$0xff]
    %v1098 = vld [vmem:[#allocation6] sm:$0xf]
    %v1099 = vld [vmem:[#allocation6 + $0x4] sm:$0xf]
    %v1100 = vld [vmem:[#allocation6 + $0x8] sm:$0xf]
    %v1101 = vld [vmem:[#allocation6 + $0xc] sm:$0xf]
    %v1102 = vld [vmem:[#allocation6 + $0x10] sm:$0xf]
    %v1103 = vld [vmem:[#allocation6 + $0x14] sm:$0xf]
    %v1104 = vld [vmem:[#allocation6 + $0x18] sm:$0xf]
    %v1105 = vld [vmem:[#allocation6 + $0x1c] sm:$0xf]
    %v1106 = vld [vmem:[#allocation6 + $0x20] sm:$0xf]
    %v1107 = vld [vmem:[#allocation6 + $0x24] sm:$0xf]
    %v1108 = vld [vmem:[#allocation6 + $0x28] sm:$0xf]
    %v1109 = vld [vmem:[#allocation6 + $0x2c] sm:$0xf]
    %v1110 = vld [vmem:[#allocation6 + $0x30] sm:$0xf]
    %v1111 = vld [vmem:[#allocation6 + $0x34] sm:$0xf]
    %v1112 = vld [vmem:[#allocation6 + $0x38] sm:$0xf]
    %v1113 = vld [vmem:[#allocation6 + $0x3c] sm:$0xf]
    %v1130 = vunpack.c.l.b16 %v1098
    %v1131 = vunpack.c.l.b16 %v1099
    %v1132 = vunpack.c.l.b16 %v1100
    %v1133 = vunpack.c.l.b16 %v1101
    %v1134 = vunpack.c.l.b16 %v1102
    %v1135 = vunpack.c.l.b16 %v1103
    %v1136 = vunpack.c.l.b16 %v1104
    %v1137 = vunpack.c.l.b16 %v1105
    %v1138 = vunpack.c.l.b16 %v1106
    %v1139 = vunpack.c.l.b16 %v1107
    %v1140 = vunpack.c.l.b16 %v1108
    %v1141 = vunpack.c.l.b16 %v1109
    %v1142 = vunpack.c.l.b16 %v1110
    %v1143 = vunpack.c.l.b16 %v1111
    %v1144 = vunpack.c.l.b16 %v1112
    %v1145 = vunpack.c.l.b16 %v1113
    %v1146 = vpack.c.b16 %v1131, %v1130
    %v1147 = vpack.c.b16 %v1133, %v1132
    %v1148 = vpack.c.b16 %v1135, %v1134
    %v1149 = vpack.c.b16 %v1137, %v1136
    %v1150 = vpack.c.b16 %v1139, %v1138
    %v1151 = vpack.c.b16 %v1141, %v1140
    %v1152 = vpack.c.b16 %v1143, %v1142
    %v1153 = vpack.c.b16 %v1145, %v1144
    %1162 = vmatpush.bf16.msra.mxu0 %v1153
    %1163 = vmatpush.bf16.msra.mxu0 %v1152
    %1164 = vmatpush.bf16.msra.mxu0 %v1151
    %1165 = vmatpush.bf16.msra.mxu0 %v1150
    %1166 = vmatpush.bf16.msra.mxu0 %v1149
    %1167 = vmatpush.bf16.msra.mxu0 %v1148
    %1168 = vmatpush.bf16.msra.mxu0 %v1147
    %1169 = vmatpush.bf16.msra.mxu0 %v1146
    %1170 = vmatmul.bf16.gmra.mxu0 0
    %v1171 = vpop.f32.mrf.mxu0
    %v1172 = vadd.f32 0.0, %v1171
    %v1173 = vpop.f32.mrf.mxu0
    %1174 = vdwg.mxu0
    %v1175 = vadd.f32 %v1097, %v1172
    %v1176 = vtanh.pop %v1175
    %v1177 = vmul.f32 %v1176, %v85
    %v1178 = vadd.f32 %v1177, %v86
    %1179 = vrot.lane.b32.xlu0 %v1178, 96
    %v1180 = vpop.permute.xlu0 %1179
    %1181 = vrot.lane.b32.xlu0 %v1178, 64
    %v1182 = vpop.permute.xlu0 %1181
    %1183 = vrot.lane.b32.xlu0 %v1178, 32
    %v1184 = vpop.permute.xlu0 %1183
    %v1185 = vmul.f32 %v1180, 0.0
    %v1186 = vmul.f32 %v1178, %v1182
    %v1187 = vadd.f32 %v1185, %v1186
    %v1188 = vsel %vm87, %v1187, 0.0
    %v1189 = vtanh.pop %v1188
    %v1190 = vmul.f32 %v1184, %v1189
    %v1191 = vld [vmem:[%s274] sm:$0xff]
    %v1192 = vpack.c.bf16 %v1190, %v1190
    %1193 = vmatpush.bf16.msra.mxu0 %v1153
    %1194 = vmatpush.bf16.msra.mxu0 %v1152
    %1195 = vmatpush.bf16.msra.mxu0 %v1151
    %1196 = vmatpush.bf16.msra.mxu0 %v1150
    %1197 = vmatpush.bf16.msra.mxu0 %v1149
    %1198 = vmatpush.bf16.msra.mxu0 %v1148
    %1199 = vmatpush.bf16.msra.mxu0 %v1147
    %1200 = vmatpush.bf16.msra.mxu0 %v1146
    %1201 = vmatmul.bf16.gmra.mxu0 %v1192
    %v1202 = vpop.f32.mrf.mxu0
    %v1203 = vadd.f32 0.0, %v1202
    %v1204 = vpop.f32.mrf.mxu0
    %1205 = vdwg.mxu0
    %v1206 = vadd.f32 %v1191, %v1203
    %v1207 = vtanh.pop %v1206
    %v1208 = vmul.f32 %v1207, %v85
    %v1209 = vadd.f32 %v1208, %v86
    %1210 = vrot.lane.b32.xlu0 %v1209, 96
    %v1211 = vpop.permute.xlu0 %1210
    %1212 = vrot.lane.b32.xlu0 %v1209, 64
    %v1213 = vpop.permute.xlu0 %1212
    %1214 = vrot.lane.b32.xlu0 %v1209, 32
    %v1215 = vpop.permute.xlu0 %1214
    %v1216 = vmul.f32 %v1211, %v1188
    %v1217 = vmul.f32 %v1209, %v1213
    %v1218 = vadd.f32 %v1216, %v1217
    %v1219 = vsel %vm87, %v1218, 0.0
    %v1220 = vtanh.pop %v1219
    %v1221 = vmul.f32 %v1215, %v1220
    %v1222 = vld [vmem:[%s372] sm:$0xff]
    %v1223 = vpack.c.bf16 %v1221, %v1221
    %1224 = vmatpush.bf16.msra.mxu0 %v1153
    %1225 = vmatpush.bf16.msra.mxu0 %v1152
    %1226 = vmatpush.bf16.msra.mxu0 %v1151
    %1227 = vmatpush.bf16.msra.mxu0 %v1150
    %1228 = vmatpush.bf16.msra.mxu0 %v1149
    %1229 = vmatpush.bf16.msra.mxu0 %v1148
    %1230 = vmatpush.bf16.msra.mxu0 %v1147
    %1231 = vmatpush.bf16.msra.mxu0 %v1146
    %1232 = vmatmul.bf16.gmra.mxu0 %v1223
    %v1233 = vpop.f32.mrf.mxu0
    %v1234 = vadd.f32 0.0, %v1233
    %v1235 = vpop.f32.mrf.mxu0
    %1236 = vdwg.mxu0
    %v1237 = vadd.f32 %v1222, %v1234
    %v1238 = vtanh.pop %v1237
    %v1239 = vmul.f32 %v1238, %v85
    %v1240 = vadd.f32 %v1239, %v86
    %1241 = vrot.lane.b32.xlu0 %v1240, 96
    %v1242 = vpop.permute.xlu0 %1241
    %1243 = vrot.lane.b32.xlu0 %v1240, 64
    %v1244 = vpop.permute.xlu0 %1243
    %1245 = vrot.lane.b32.xlu0 %v1240, 32
    %v1246 = vpop.permute.xlu0 %1245
    %v1247 = vmul.f32 %v1242, %v1219
    %v1248 = vmul.f32 %v1240, %v1244
    %v1249 = vadd.f32 %v1247, %v1248
    %v1250 = vsel %vm87, %v1249, 0.0
    %v1251 = vtanh.pop %v1250
    %v1252 = vmul.f32 %v1246, %v1251
    %v1253 = vld [vmem:[%s470] sm:$0xff]
    %v1254 = vpack.c.bf16 %v1252, %v1252
    %1255 = vmatpush.bf16.msra.mxu0 %v1153
    %1256 = vmatpush.bf16.msra.mxu0 %v1152
    %1257 = vmatpush.bf16.msra.mxu0 %v1151
    %1258 = vmatpush.bf16.msra.mxu0 %v1150
    %1259 = vmatpush.bf16.msra.mxu0 %v1149
    %1260 = vmatpush.bf16.msra.mxu0 %v1148
    %1261 = vmatpush.bf16.msra.mxu0 %v1147
    %1262 = vmatpush.bf16.msra.mxu0 %v1146
    %1263 = vmatmul.bf16.gmra.mxu0 %v1254
    %v1264 = vpop.f32.mrf.mxu0
    %v1265 = vadd.f32 0.0, %v1264
    %v1266 = vpop.f32.mrf.mxu0
    %1267 = vdwg.mxu0
    %v1268 = vadd.f32 %v1253, %v1265
    %v1269 = vtanh.pop %v1268
    %v1270 = vmul.f32 %v1269, %v85
    %v1271 = vadd.f32 %v1270, %v86
    %1272 = vrot.lane.b32.xlu0 %v1271, 96
    %v1273 = vpop.permute.xlu0 %1272
    %1274 = vrot.lane.b32.xlu0 %v1271, 64
    %v1275 = vpop.permute.xlu0 %1274
    %1276 = vrot.lane.b32.xlu0 %v1271, 32
    %v1277 = vpop.permute.xlu0 %1276
    %v1278 = vmul.f32 %v1273, %v1250
    %v1279 = vmul.f32 %v1271, %v1275
    %v1280 = vadd.f32 %v1278, %v1279
    %v1281 = vsel %vm87, %v1280, 0.0
    %v1282 = vtanh.pop %v1281
    %v1283 = vmul.f32 %v1277, %v1282
    %v1284 = vld [vmem:[%s568] sm:$0xff]
    %v1285 = vpack.c.bf16 %v1283, %v1283
    %1286 = vmatpush.bf16.msra.mxu0 %v1153
    %1287 = vmatpush.bf16.msra.mxu0 %v1152
    %1288 = vmatpush.bf16.msra.mxu0 %v1151
    %1289 = vmatpush.bf16.msra.mxu0 %v1150
    %1290 = vmatpush.bf16.msra.mxu0 %v1149
    %1291 = vmatpush.bf16.msra.mxu0 %v1148
    %1292 = vmatpush.bf16.msra.mxu0 %v1147
    %1293 = vmatpush.bf16.msra.mxu0 %v1146
    %1294 = vmatmul.bf16.gmra.mxu0 %v1285
    %v1295 = vpop.f32.mrf.mxu0
    %v1296 = vadd.f32 0.0, %v1295
    %v1297 = vpop.f32.mrf.mxu0
    %1298 = vdwg.mxu0
    %v1299 = vadd.f32 %v1284, %v1296
    %v1300 = vtanh.pop %v1299
    %v1301 = vmul.f32 %v1300, %v85
    %v1302 = vadd.f32 %v1301, %v86
    %1303 = vrot.lane.b32.xlu0 %v1302, 96
    %v1304 = vpop.permute.xlu0 %1303
    %1305 = vrot.lane.b32.xlu0 %v1302, 64
    %v1306 = vpop.permute.xlu0 %1305
    %1307 = vrot.lane.b32.xlu0 %v1302, 32
    %v1308 = vpop.permute.xlu0 %1307
    %v1309 = vmul.f32 %v1304, %v1281
    %v1310 = vmul.f32 %v1302, %v1306
    %v1311 = vadd.f32 %v1309, %v1310
    %v1312 = vsel %vm87, %v1311, 0.0
    %v1313 = vtanh.pop %v1312
    %v1314 = vmul.f32 %v1308, %v1313
    %v1315 = vld [vmem:[%s666] sm:$0xff]
    %v1316 = vpack.c.bf16 %v1314, %v1314
    %1317 = vmatpush.bf16.msra.mxu0 %v1153
    %1318 = vmatpush.bf16.msra.mxu0 %v1152
    %1319 = vmatpush.bf16.msra.mxu0 %v1151
    %1320 = vmatpush.bf16.msra.mxu0 %v1150
    %1321 = vmatpush.bf16.msra.mxu0 %v1149
    %1322 = vmatpush.bf16.msra.mxu0 %v1148
    %1323 = vmatpush.bf16.msra.mxu0 %v1147
    %1324 = vmatpush.bf16.msra.mxu0 %v1146
    %1325 = vmatmul.bf16.gmra.mxu0 %v1316
    %v1326 = vpop.f32.mrf.mxu0
    %v1327 = vadd.f32 0.0, %v1326
    %v1328 = vpop.f32.mrf.mxu0
    %1329 = vdwg.mxu0
    %v1330 = vadd.f32 %v1315, %v1327
    %v1331 = vtanh.pop %v1330
    %v1332 = vmul.f32 %v1331, %v85
    %v1333 = vadd.f32 %v1332, %v86
    %1334 = vrot.lane.b32.xlu0 %v1333, 96
    %v1335 = vpop.permute.xlu0 %1334
    %1336 = vrot.lane.b32.xlu0 %v1333, 64
    %v1337 = vpop.permute.xlu0 %1336
    %1338 = vrot.lane.b32.xlu0 %v1333, 32
    %v1339 = vpop.permute.xlu0 %1338
    %v1340 = vmul.f32 %v1335, %v1312
    %v1341 = vmul.f32 %v1333, %v1337
    %v1342 = vadd.f32 %v1340, %v1341
    %v1343 = vsel %vm87, %v1342, 0.0
    %v1344 = vtanh.pop %v1343
    %v1345 = vmul.f32 %v1339, %v1344
    %v1346 = vld [vmem:[%s764] sm:$0xff]
    %v1347 = vpack.c.bf16 %v1345, %v1345
    %1348 = vmatpush.bf16.msra.mxu0 %v1153
    %1349 = vmatpush.bf16.msra.mxu0 %v1152
    %1350 = vmatpush.bf16.msra.mxu0 %v1151
    %1351 = vmatpush.bf16.msra.mxu0 %v1150
    %1352 = vmatpush.bf16.msra.mxu0 %v1149
    %1353 = vmatpush.bf16.msra.mxu0 %v1148
    %1354 = vmatpush.bf16.msra.mxu0 %v1147
    %1355 = vmatpush.bf16.msra.mxu0 %v1146
    %1356 = vmatmul.bf16.gmra.mxu0 %v1347
    %v1357 = vpop.f32.mrf.mxu0
    %v1358 = vadd.f32 0.0, %v1357
    %v1359 = vpop.f32.mrf.mxu0
    %1360 = vdwg.mxu0
    %v1361 = vadd.f32 %v1346, %v1358
    %v1362 = vtanh.pop %v1361
    %v1363 = vmul.f32 %v1362, %v85
    %v1364 = vadd.f32 %v1363, %v86
    %1365 = vrot.lane.b32.xlu0 %v1364, 96
    %v1366 = vpop.permute.xlu0 %1365
    %1367 = vrot.lane.b32.xlu0 %v1364, 64
    %v1368 = vpop.permute.xlu0 %1367
    %1369 = vrot.lane.b32.xlu0 %v1364, 32
    %v1370 = vpop.permute.xlu0 %1369
    %v1371 = vmul.f32 %v1366, %v1343
    %v1372 = vmul.f32 %v1364, %v1368
    %v1373 = vadd.f32 %v1371, %v1372
    %v1374 = vsel %vm87, %v1373, 0.0
    %v1375 = vtanh.pop %v1374
    %v1376 = vmul.f32 %v1370, %v1375
    %v1377 = vld [vmem:[%s862] sm:$0xff]
    %v1378 = vpack.c.bf16 %v1376, %v1376
    %1379 = vmatpush.bf16.msra.mxu0 %v1153
    %1380 = vmatpush.bf16.msra.mxu0 %v1152
    %1381 = vmatpush.bf16.msra.mxu0 %v1151
    %1382 = vmatpush.bf16.msra.mxu0 %v1150
    %1383 = vmatpush.bf16.msra.mxu0 %v1149
    %1384 = vmatpush.bf16.msra.mxu0 %v1148
    %1385 = vmatpush.bf16.msra.mxu0 %v1147
    %1386 = vmatpush.bf16.msra.mxu0 %v1146
    %1387 = vmatmul.bf16.gmra.mxu0 %v1378
    %v1388 = vpop.f32.mrf.mxu0
    %v1389 = vadd.f32 0.0, %v1388
    %v1390 = vpop.f32.mrf.mxu0
    %1391 = vdwg.mxu0
    %v1392 = vadd.f32 %v1377, %v1389
    %v1393 = vtanh.pop %v1392
    %v1394 = vmul.f32 %v1393, %v85
    %v1395 = vadd.f32 %v1394, %v86
    %1396 = vrot.lane.b32.xlu0 %v1395, 96
    %v1397 = vpop.permute.xlu0 %1396
    %1398 = vrot.lane.b32.xlu0 %v1395, 64
    %v1399 = vpop.permute.xlu0 %1398
    %1400 = vrot.lane.b32.xlu0 %v1395, 32
    %v1401 = vpop.permute.xlu0 %1400
    %v1402 = vmul.f32 %v1397, %v1374
    %v1403 = vmul.f32 %v1395, %v1399
    %v1404 = vadd.f32 %v1402, %v1403
    %v1405 = vsel %vm87, %v1404, 0.0
    %v1406 = vtanh.pop %v1405
    %v1407 = vmul.f32 %v1401, %v1406
    %v1408 = vpack.c.bf16 %v1407, %v1407
    %v1409 = vld [vmem:[#allocation8] sm:$0xf]
    %v1410 = vld [vmem:[#allocation8 + $0x4] sm:$0xf]
    %v1411 = vld [vmem:[#allocation8 + $0x8] sm:$0xf]
    %v1412 = vld [vmem:[#allocation8 + $0xc] sm:$0xf]
    %v1413 = vld [vmem:[#allocation8 + $0x10] sm:$0xf]
    %v1414 = vld [vmem:[#allocation8 + $0x14] sm:$0xf]
    %v1415 = vld [vmem:[#allocation8 + $0x18] sm:$0xf]
    %v1416 = vld [vmem:[#allocation8 + $0x1c] sm:$0xf]
    %v1417 = vld [vmem:[#allocation8 + $0x20] sm:$0xf]
    %v1418 = vld [vmem:[#allocation8 + $0x24] sm:$0xf]
    %v1419 = vld [vmem:[#allocation8 + $0x28] sm:$0xf]
    %v1420 = vld [vmem:[#allocation8 + $0x2c] sm:$0xf]
    %v1421 = vld [vmem:[#allocation8 + $0x30] sm:$0xf]
    %v1422 = vld [vmem:[#allocation8 + $0x34] sm:$0xf]
    %v1423 = vld [vmem:[#allocation8 + $0x38] sm:$0xf]
    %v1424 = vld [vmem:[#allocation8 + $0x3c] sm:$0xf]
    %v1425 = vld [vmem:[%s8] sm:$0x1]
    %v1427 = vperm.slane %v1425, 0
    %v1445 = vunpack.c.l.b16 %v1409
    %v1446 = vunpack.c.l.b16 %v1410
    %v1447 = vunpack.c.l.b16 %v1411
    %v1448 = vunpack.c.l.b16 %v1412
    %v1449 = vunpack.c.l.b16 %v1413
    %v1450 = vunpack.c.l.b16 %v1414
    %v1451 = vunpack.c.l.b16 %v1415
    %v1452 = vunpack.c.l.b16 %v1416
    %v1453 = vunpack.c.l.b16 %v1417
    %v1454 = vunpack.c.l.b16 %v1418
    %v1455 = vunpack.c.l.b16 %v1419
    %v1456 = vunpack.c.l.b16 %v1420
    %v1457 = vunpack.c.l.b16 %v1421
    %v1458 = vunpack.c.l.b16 %v1422
    %v1459 = vunpack.c.l.b16 %v1423
    %v1460 = vunpack.c.l.b16 %v1424
    %v1461 = vpack.c.b16 %v1446, %v1445
    %v1462 = vpack.c.b16 %v1448, %v1447
    %v1463 = vpack.c.b16 %v1450, %v1449
    %v1464 = vpack.c.b16 %v1452, %v1451
    %v1465 = vpack.c.b16 %v1454, %v1453
    %v1466 = vpack.c.b16 %v1456, %v1455
    %v1467 = vpack.c.b16 %v1458, %v1457
    %v1468 = vpack.c.b16 %v1460, %v1459
    %1477 = vmatpush.bf16.msra.mxu0 %v1468
    %1478 = vmatpush.bf16.msra.mxu0 %v1467
    %1479 = vmatpush.bf16.msra.mxu0 %v1466
    %1480 = vmatpush.bf16.msra.mxu0 %v1465
    %1481 = vmatpush.bf16.msra.mxu0 %v1464
    %1482 = vmatpush.bf16.msra.mxu0 %v1463
    %1483 = vmatpush.bf16.msra.mxu0 %v1462
    %1484 = vmatpush.bf16.msra.mxu0 %v1461
    %1485 = vmatmul.bf16.gmra.mxu0 %v1408
    %v1486 = vpop.f32.mrf.mxu0
    %v1487 = vadd.f32 %v1427, %v1486
    %v1488 = vpop.f32.mrf.mxu0
    %1489 = vdwg.mxu0
    %1490 = vst [vmem:[%s9] sm:$0xff] %v1487
    // Predicated region
    $region50: #{mnist_model_forward.1} parent=1 // pred_check
      _
    $region51: #{mnist_model_forward.1} parent=1 // pred_check_branch
      %1492 = sbr.rel (0) target = $region53
    $region52: #{mnist_model_forward.1} parent=1 // pred_region
      _
    $region53: #{mnist_model_forward.1} parent=1 // pred_fallthru
      _
    // Predicated region
    $region54: #{mnist_model_forward.1} parent=1 // pred_check
      _
    $region55: #{mnist_model_forward.1} parent=1 // pred_check_branch
      %1494 = sbr.rel (0) target = $region57
    $region56: #{mnist_model_forward.1} parent=1 // pred_region
      _
    $region57: #{mnist_model_forward.1} parent=1 // pred_fallthru
      _
    %1495 = vsyncpa [#allocation5], 1
    %1496 = vsyncpa [#allocation7], 1

</llo_original>
